<compile_context>
chip_gen: v7x
topology: tpu7x:2x2x1
jax: 0.10.0
libtpu: 0.0.40
codegen_flags: <defaults>
</compile_context>

<pallas_src>
import jax
import jax.numpy as jnp
from jax.experimental import pallas as pl
from jax.experimental.pallas import tpu as pltpu

FPN_CH = 256        # FPN width used by EfficientPS
LEAKY_SLOPE = 0.01  # iABN default activation: leaky_relu(0.01)
BN_EPS = 1e-5

# f32 keeps the self-test tolerance tight.  On v6e/v7x set to jnp.bfloat16 to hit the
# wide bf16 MXU and halve weight DMA (keep f32 accumulation + f32 epilogue, and loosen
# the tolerance — the K=2048 level is the sensitive one).  v5e: keep f32 everywhere.
MATMUL_DTYPE = jnp.float32

VMEM_LIMIT = 48 * 1024 * 1024  # explicit scoped-VMEM budget (fits v7x's 64 MiB VMEM)


def _vmem():
    return pl.BlockSpec(memory_space=pltpu.MemorySpace.VMEM)


# ---------------------------------------------------------------------------
# Kernel 1: fused up/down 1x1 conv of one pyramid level.
#   One MXU matmul with concatenated (cin, 512) weights + folded BN + leaky_relu,
#   lane-split into the up (first 256) and down (last 256) halves.
#   The "_res" variant fuses the down-path residual add (upsampled coarser level).
# ---------------------------------------------------------------------------
def _dual_conv_compute(x_ref, w_ref, scale_ref, bias_ref):
    y = jnp.dot(x_ref[...].astype(MATMUL_DTYPE), w_ref[...].astype(MATMUL_DTYPE),
                preferred_element_type=jnp.float32)
    y = y * scale_ref[...] + bias_ref[...]          # folded inference BatchNorm
    return jnp.where(y >= 0.0, y, LEAKY_SLOPE * y)  # iABN leaky_relu


def _dual_conv_kernel(x_ref, w_ref, scale_ref, bias_ref, up_ref, down_ref):
    y = _dual_conv_compute(x_ref, w_ref, scale_ref, bias_ref)
    up_ref[...] = y[:, :FPN_CH]
    down_ref[...] = y[:, FPN_CH:]


def _dual_conv_res_kernel(x_ref, w_ref, scale_ref, bias_ref, res_ref, up_ref, down_ref):
    y = _dual_conv_compute(x_ref, w_ref, scale_ref, bias_ref)
    up_ref[...] = y[:, :FPN_CH]
    down_ref[...] = y[:, FPN_CH:] + res_ref[...]    # fused "+ upsample(b_{k+1}_down)"


def dual_conv_level(x_nhwc, w_cat, scale_cat, bias_cat, residual_flat=None):
    """Returns (up_raw, down) as (N,H,W,256) tensors."""
    n, h, w, cin = x_nhwc.shape
    m = n * h * w
    cout2 = w_cat.shape[1]  # 512
    xf = x_nhwc.reshape(m, cin)
    # Grid over flattened M with lane-dense blocks; at production resolutions sweep tm
    # upward on v6e (128 MiB VMEM) and keep ~1024 on v7x (64 MiB).
    tm = min(m, 1024)
    grid = (pl.cdiv(m, tm),)
    x_spec = pl.BlockSpec((tm, cin), lambda i: (i, 0))
    w_spec = pl.BlockSpec((cin, cout2), lambda i: (0, 0))
    v_spec = pl.BlockSpec((1, cout2), lambda i: (0, 0))
    o_spec = pl.BlockSpec((tm, FPN_CH), lambda i: (i, 0))
    out_shape = (jax.ShapeDtypeStruct((m, FPN_CH), jnp.float32),
                 jax.ShapeDtypeStruct((m, FPN_CH), jnp.float32))
    cparams = pltpu.CompilerParams(dimension_semantics=("parallel",),
                                   vmem_limit_bytes=VMEM_LIMIT)
    if residual_flat is None:
        up, down = pl.pallas_call(
            _dual_conv_kernel, grid=grid,
            in_specs=[x_spec, w_spec, v_spec, v_spec],
            out_specs=(o_spec, o_spec), out_shape=out_shape,
            compiler_params=cparams,
        )(xf, w_cat, scale_cat, bias_cat)
    else:
        up, down = pl.pallas_call(
            _dual_conv_res_kernel, grid=grid,
            in_specs=[x_spec, w_spec, v_spec, v_spec, o_spec],
            out_specs=(o_spec, o_spec), out_shape=out_shape,
            compiler_params=cparams,
        )(xf, w_cat, scale_cat, bias_cat, residual_flat)
    return up.reshape(n, h, w, FPN_CH), down.reshape(n, h, w, FPN_CH)


# ---------------------------------------------------------------------------
# Kernel 2: fused MaxPool 3x3 s2 ("static same", zero fill) + residual add:
#   out = raw_up + maxpool(prev_up).
# prev_up arrives as four even/odd decimated views (all (N,H,W,C)); inside the kernel
# everything is elementwise maxes, free H-axis slices and a single W+1 VMEM scratch
# whose extra zero column plays the role of the right zero pad (one lane-dense store).
# ---------------------------------------------------------------------------
def _pool_add_kernel(raw_ref, ee_ref, eo_ref, oe_ref, oo_ref, o_ref, vpad_ref):
    n, h, w, c = raw_ref.shape
    ee = ee_ref[...]
    eo = eo_ref[...]
    oe = oe_ref[...]
    oo = oo_ref[...]
    # Vertical 3-tap max (input rows 2i, 2i+1, 2i+2) at the even columns, written into
    # a width-(w+1) scratch; the extra zero column = the right zero pad (col 2W).
    ve = jnp.maximum(ee, oe)
    vpad_ref[:, :, w:w + 1, :] = jnp.zeros((n, h, 1, c), jnp.float32)
    vpad_ref[:, :h - 1, 0:w, :] = jnp.maximum(ve[:, :h - 1], ee[:, 1:])
    vpad_ref[:, h - 1:, 0:w, :] = jnp.maximum(ve[:, h - 1:], 0.0)  # bottom zero-pad row
    ve3 = vpad_ref[:, :, 0:w, :]        # window columns 2j
    ve3_r = vpad_ref[:, :, 1:w + 1, :]  # window columns 2j+2 (zero at j = w-1)
    hmax = jnp.maximum(ve3, ve3_r)
    vo = jnp.maximum(eo, oo)            # window columns 2j+1, rows 2i / 2i+1
    # rows 2i+2 at odd columns come from eo shifted down by one output row
    o_ref[:, :h - 1] = raw_ref[:, :h - 1] + jnp.maximum(
        hmax[:, :h - 1], jnp.maximum(vo[:, :h - 1], eo[:, 1:]))
    o_ref[:, h - 1:] = raw_ref[:, h - 1:] + jnp.maximum(
        hmax[:, h - 1:], jnp.maximum(vo[:, h - 1:], 0.0))


def pool_add(raw_up, prev_up):
    """raw_up: (N,H,W,C) conv output at level k;  prev_up: (N,2H,2W,C) finer level."""
    n, h, w, c = raw_up.shape
    # TODO(synk): the stride-2 even/odd decimation of prev_up stays in XLA — a strided
    # sublane gather has no clean, portable in-kernel Pallas lowering here.
    ee = prev_up[:, 0::2, 0::2, :]
    eo = prev_up[:, 0::2, 1::2, :]
    oe = prev_up[:, 1::2, 0::2, :]
    oo = prev_up[:, 1::2, 1::2, :]
    return pl.pallas_call(
        _pool_add_kernel,
        out_shape=jax.ShapeDtypeStruct((n, h, w, c), jnp.float32),
        in_specs=[_vmem()] * 5,
        out_specs=_vmem(),
        scratch_shapes=[pltpu.VMEM((n, h, w + 1, c), jnp.float32)],
        compiler_params=pltpu.CompilerParams(vmem_limit_bytes=VMEM_LIMIT),
    )(raw_up, ee, eo, oe, oo)


# ---------------------------------------------------------------------------
# Kernel 3: fused separable block for pK extraction:
#   x = b_up + b_down; depthwise 3x3 (SAME); pointwise 1x1 (MXU); folded BN; leaky.
# The depthwise result lives in a VMEM scratch (no HBM roundtrip).  Column +-1 taps are
# hoisted (2 shifted views total); row +-1 taps are free H-axis slice accumulates.
# ---------------------------------------------------------------------------
def _sep_block_kernel(xa_ref, xb_ref, dwt_ref, pw_ref, scale_ref, bias_ref,
                      o_ref, padw_ref, acc_ref):
    n, h, w, c = xa_ref.shape
    x = xa_ref[...] + xb_ref[...]                    # fused "b_up + b_down"

    # W-padded copy (1 zero column each side) so the +-1 column taps are plain slices.
    padw_ref[:, :, 0:1, :] = jnp.zeros((n, h, 1, c), jnp.float32)
    padw_ref[:, :, w + 1:w + 2, :] = jnp.zeros((n, h, 1, c), jnp.float32)
    padw_ref[:, :, 1:w + 1, :] = x
    x_l = padw_ref[:, :, 0:w, :]                     # x[:, :, j-1, :] (zero at j=0)
    x_r = padw_ref[:, :, 2:w + 2, :]                 # x[:, :, j+1, :] (zero at j=w-1)

    taps = dwt_ref[...]                              # (9, c) depthwise taps

    def tap(k):
        return taps[k, :].reshape(1, 1, 1, c)

    def rowmix(xl, xc, xr, ky):
        return xl * tap(3 * ky + 0) + xc * tap(3 * ky + 1) + xr * tap(3 * ky + 2)

    # ky = 1 (centre row) covers every output row.
    acc_ref[...] = rowmix(x_l, x, x_r, 1)
    # ky = 0: output row i reads input row i-1  -> rows 1..h-1 from rows 0..h-2.
    acc_ref[:, 1:, :, :] += rowmix(x_l[:, :h - 1], x[:, :h - 1], x_r[:, :h - 1], 0)
    # ky = 2: output row i reads input row i+1  -> rows 0..h-2 from rows 1..h-1.
    acc_ref[:, :h - 1, :, :] += rowmix(x_l[:, 1:], x[:, 1:], x_r[:, 1:], 2)

    dw = acc_ref[...]
    pw = pw_ref[...]
    scale = scale_ref[...]
    bias = bias_ref[...]
    if w % 8 == 0:
        # Lane/sublane-tile preserving flatten -> one big MXU matmul.
        m = n * h * w
        y = jnp.dot(dw.reshape(m, c).astype(MATMUL_DTYPE), pw.astype(MATMUL_DTYPE),
                    preferred_element_type=jnp.float32)
        y = y * scale + bias
        o_ref[...] = jnp.where(y >= 0.0, y, LEAKY_SLOPE * y)
    else:
        # Tiny levels (W < 8, i.e. 4x4 / 2x2 spatial): per-row matmuls avoid a
        # sublane-repacking reshape; at most N*H = 8 small dots.
        for ni in range(n):
            for hi in range(h):
                row = dw[ni, hi]                     # (w, c)
                y = jnp.dot(row.astype(MATMUL_DTYPE), pw.astype(MATMUL_DTYPE),
                            preferred_element_type=jnp.float32)
                y = y * scale + bias
                y = jnp.where(y >= 0.0, y, LEAKY_SLOPE * y)
                r0 = (ni * h + hi) * w
                o_ref[r0:r0 + w, :] = y


def sep_conv_block(p, xa, xb):
    n, h, w, c = xa.shape
    m = n * h * w
    out = pl.pallas_call(
        _sep_block_kernel,
        out_shape=jax.ShapeDtypeStruct((m, c), jnp.float32),
        in_specs=[_vmem()] * 6,
        out_specs=_vmem(),
        scratch_shapes=[pltpu.VMEM((n, h, w + 2, c), jnp.float32),   # W-padded sum
                        pltpu.VMEM((n, h, w, c), jnp.float32)],      # depthwise result
        compiler_params=pltpu.CompilerParams(vmem_limit_bytes=VMEM_LIMIT),
    )(xa, xb, p["dw"], p["pw"], p["scale"].reshape(1, c), p["bias"].reshape(1, c))
    return out.reshape(n, h, w, c)


# ---------------------------------------------------------------------------
# Glue: nearest-neighbour x2 upsample.
# TODO(synk): kept in XLA — the W-direction interleave is a strided sublane relayout
# with no clean, portable in-kernel lowering; the add itself is fused into the
# consuming 1x1-conv kernel (see _dual_conv_res_kernel) so the raw down tensor never
# makes an extra HBM roundtrip.
# ---------------------------------------------------------------------------
def upsample2_nearest(x):
    return jnp.repeat(jnp.repeat(x, 2, axis=1), 2, axis=2)


# ---------------------------------------------------------------------------
# DualFPN forward (Pallas version): 11 pallas_calls total.
# ---------------------------------------------------------------------------
def dual_fpn_forward(params, inputs):
    b1, b2, b3, b4 = inputs

    def fuse(pu, pd):  # concatenate up/down 1x1 blocks: one matmul per level
        w = jnp.concatenate([pu["w"], pd["w"]], axis=1)                    # (cin, 512)
        s = jnp.concatenate([pu["scale"], pd["scale"]]).reshape(1, -1)     # (1, 512)
        b = jnp.concatenate([pu["bias"], pd["bias"]]).reshape(1, -1)       # (1, 512)
        return w, s, b

    w4, s4, c4 = fuse(params["conv4_up"], params["conv4_down"])
    w3, s3, c3 = fuse(params["conv3_up"], params["conv3_down"])
    w2, s2, c2 = fuse(params["conv2_up"], params["conv2_down"])
    w1, s1, c1 = fuse(params["conv1_up"], params["conv1_down"])

    # Combined up/down 1x1 convs, coarse -> fine, fusing the down-path residual add.
    up4_raw, b4_down = dual_conv_level(b4, w4, s4, c4)
    r3 = upsample2_nearest(b4_down)
    up3_raw, b3_down = dual_conv_level(b3, w3, s3, c3, r3.reshape(-1, FPN_CH))
    r2 = upsample2_nearest(b3_down)
    up2_raw, b2_down = dual_conv_level(b2, w2, s2, c2, r2.reshape(-1, FPN_CH))
    r1 = upsample2_nearest(b2_down)
    up1_raw, b1_down = dual_conv_level(b1, w1, s1, c1, r1.reshape(-1, FPN_CH))

    # Left-to-right FPN: fused maxpool(3,2,"same") + add, fine -> coarse.
    b1_up = up1_raw
    b2_up = pool_add(up2_raw, b1_up)
    b3_up = pool_add(up3_raw, b2_up)
    b4_up = pool_add(up4_raw, b3_up)

    # p32 .. p4 extraction (fully fused separable blocks).
    p32 = sep_conv_block(params["p32"], b4_up, b4_down)
    p16 = sep_conv_block(params["p16"], b3_up, b3_down)
    p8 = sep_conv_block(params["p8"], b2_up, b2_down)
    p4 = sep_conv_block(params["p4"], b1_up, b1_down)
    return [p32, p16, p8, p4]


# ---------------------------------------------------------------------------
# Deterministic parameter construction (synthetic; no checkpoint loading).
# ---------------------------------------------------------------------------
def _make_bn(key, c):
    k1, k2, k3, k4 = jax.random.split(key, 4)
    gamma = 1.0 + 0.1 * jax.random.normal(k1, (c,))
    beta = 0.1 * jax.random.normal(k2, (c,))
    mean = 0.1 * jax.random.normal(k3, (c,))
    var = jnp.abs(1.0 + 0.1 * jax.random.normal(k4, (c,)))
    scale = gamma * jax.lax.rsqrt(var + BN_EPS)
    bias = beta - mean * scale
    return scale.astype(jnp.float32), bias.astype(jnp.float32)


def _make_conv1d_block(key, cin):
    kw, kb = jax.random.split(key)
    w = (jax.random.normal(kw, (cin, FPN_CH)) / jnp.sqrt(cin)).astype(jnp.float32)
    scale, bias = _make_bn(kb, FPN_CH)
    return {"w": w, "scale": scale, "bias": bias}


def _make_sep_block(key):
    k1, k2, k3 = jax.random.split(key, 3)
    dw = (0.1 * jax.random.normal(k1, (9, FPN_CH))).astype(jnp.float32)  # 3x3 dw taps
    pw = (jax.random.normal(k2, (FPN_CH, FPN_CH)) / jnp.sqrt(FPN_CH)).astype(jnp.float32)
    scale, bias = _make_bn(k3, FPN_CH)
    return {"dw": dw, "pw": pw, "scale": scale, "bias": bias}


# ---------------------------------------------------------------------------
# Pure-JAX reference (for correctness check only).
# ---------------------------------------------------------------------------
def _ref_conv_block(p, x, residual=None):
    y = jnp.einsum("nhwc,cf->nhwf", x, p["w"], precision=jax.lax.Precision.HIGHEST)
    y = y * p["scale"] + p["bias"]
    y = jnp.where(y >= 0.0, y, LEAKY_SLOPE * y)
    return y if residual is None else y + residual


def _ref_maxpool(x):
    xp = jnp.pad(x, ((0, 0), (0, 1), (0, 1), (0, 0)))          # zero fill, like F.pad
    return jax.lax.reduce_window(xp, -jnp.inf, jax.lax.max,
                                 (1, 3, 3, 1), (1, 2, 2, 1), "VALID")


def _ref_sep_block(p, xa, xb):
    x = xa + xb
    dw = p["dw"].reshape(3, 3, 1, FPN_CH)
    y = jax.lax.conv_general_dilated(
        x, dw, (1, 1), "SAME",
        dimension_numbers=("NHWC", "HWIO", "NHWC"),
        feature_group_count=FPN_CH,
        precision=jax.lax.Precision.HIGHEST)
    return _ref_conv_block({"w": p["pw"], "scale": p["scale"], "bias": p["bias"]}, y)


def dual_fpn_reference(params, inputs):
    b1, b2, b3, b4 = inputs
    b1_up = _ref_conv_block(params["conv1_up"], b1)
    b2_up = _ref_conv_block(params["conv2_up"], b2, _ref_maxpool(b1_up))
    b3_up = _ref_conv_block(params["conv3_up"], b3, _ref_maxpool(b2_up))
    b4_up = _ref_conv_block(params["conv4_up"], b4, _ref_maxpool(b3_up))
    b4_down = _ref_conv_block(params["conv4_down"], b4)
    b3_down = _ref_conv_block(params["conv3_down"], b3, upsample2_nearest(b4_down))
    b2_down = _ref_conv_block(params["conv2_down"], b2, upsample2_nearest(b3_down))
    b1_down = _ref_conv_block(params["conv1_down"], b1, upsample2_nearest(b2_down))
    p32 = _ref_sep_block(params["p32"], b4_up, b4_down)
    p16 = _ref_sep_block(params["p16"], b3_up, b3_down)
    p8 = _ref_sep_block(params["p8"], b2_up, b2_down)
    p4 = _ref_sep_block(params["p4"], b1_up, b1_down)
    return [p32, p16, p8, p4]


# ---------------------------------------------------------------------------
if __name__ == "__main__":
    root = jax.random.PRNGKey(0)
    ks = jax.random.split(root, 17)

    params = {
        "conv1_up": _make_conv1d_block(ks[0], 40),
        "conv2_up": _make_conv1d_block(ks[1], 64),
        "conv3_up": _make_conv1d_block(ks[2], 176),
        "conv4_up": _make_conv1d_block(ks[3], 2048),
        "conv1_down": _make_conv1d_block(ks[4], 40),
        "conv2_down": _make_conv1d_block(ks[5], 64),
        "conv3_down": _make_conv1d_block(ks[6], 176),
        "conv4_down": _make_conv1d_block(ks[7], 2048),
        "p32": _make_sep_block(ks[8]),
        "p16": _make_sep_block(ks[9]),
        "p8": _make_sep_block(ks[10]),
        "p4": _make_sep_block(ks[11]),
    }

    # EfficientNet-B5 pyramid levels (NHWC), small spatial sizes:
    b1 = jax.random.normal(ks[12], (2, 16, 16, 40), jnp.float32)     # stride-4 level
    b2 = jax.random.normal(ks[13], (2, 8, 8, 64), jnp.float32)       # stride-8 level
    b3 = jax.random.normal(ks[14], (2, 4, 4, 176), jnp.float32)      # stride-16 level
    b4 = jax.random.normal(ks[15], (2, 2, 2, 2048), jnp.float32)     # stride-32 level

    outs = dual_fpn_forward(params, (b1, b2, b3, b4))
    outs = jax.block_until_ready(outs)

    refs = dual_fpn_reference(params, (b1, b2, b3, b4))
    for name, o, r in zip(("p32", "p16", "p8", "p4"), outs, refs):
        assert o.shape == r.shape, (name, o.shape, r.shape)
        err = float(jnp.max(jnp.abs(o - r)))
        assert err < 5e-3, (name, err)

    print("KERNEL_OK")
</pallas_src>

<mosaic_0001>
module attributes {stable_mosaic.version = 11 : i64} {
  func.func @_dual_conv_kernel(%arg0: i32, %arg1: memref<8x2048xf32, #tpu.memory_space<vmem>>, %arg2: memref<2048x512xf32, #tpu.memory_space<vmem>>, %arg3: memref<1x512xf32, #tpu.memory_space<vmem>>, %arg4: memref<1x512xf32, #tpu.memory_space<vmem>>, %arg5: memref<8x256xf32, #tpu.memory_space<vmem>>, %arg6: memref<8x256xf32, #tpu.memory_space<vmem>>) attributes {dimension_semantics = [#tpu.dimension_semantics<parallel>], iteration_bounds = array<i64: 1>, scalar_prefetch = 0 : i64, scratch_operands = 0 : i64, tpu.core_type = #tpu.core_type<tc>, window_params = [{transform_indices = @transform_0, window_bounds = array<i64: 8, 2048>}, {pipeline_mode = #tpu.pipeline_mode<synchronous>, transform_indices = @transform_1, window_bounds = array<i64: 2048, 512>}, {pipeline_mode = #tpu.pipeline_mode<synchronous>, transform_indices = @transform_2, window_bounds = array<i64: 1, 512>}, {pipeline_mode = #tpu.pipeline_mode<synchronous>, transform_indices = @transform_3, window_bounds = array<i64: 1, 512>}, {transform_indices = @transform_4, window_bounds = array<i64: 8, 256>}, {transform_indices = @transform_5, window_bounds = array<i64: 8, 256>}]} {
    %c0 = arith.constant 0 : index
    %c0_0 = arith.constant 0 : index
    %0 = vector.load %arg1[%c0, %c0_0] : memref<8x2048xf32, #tpu.memory_space<vmem>>, vector<8x2048xf32>
    %c0_1 = arith.constant 0 : index
    %c0_2 = arith.constant 0 : index
    %1 = vector.load %arg2[%c0_1, %c0_2] : memref<2048x512xf32, #tpu.memory_space<vmem>>, vector<2048x512xf32>
    %cst = arith.constant dense<0.000000e+00> : vector<8x512xf32>
    %2 = tpu.matmul %0, %1, %cst {dimension_numbers = #tpu.dot_dimension_numbers<[1], [0], [0], [1], [0, 0, 1, 1], [], []>} : vector<8x2048xf32>, vector<2048x512xf32>, vector<8x512xf32> -> vector<8x512xf32>
    %c0_3 = arith.constant 0 : index
    %c0_4 = arith.constant 0 : index
    %3 = vector.load %arg3[%c0_3, %c0_4] : memref<1x512xf32, #tpu.memory_space<vmem>>, vector<1x512xf32>
    %4 = vector.broadcast %3 : vector<1x512xf32> to vector<8x512xf32>
    %5 = arith.mulf %2, %4 : vector<8x512xf32>
    %c0_5 = arith.constant 0 : index
    %c0_6 = arith.constant 0 : index
    %6 = vector.load %arg4[%c0_5, %c0_6] : memref<1x512xf32, #tpu.memory_space<vmem>>, vector<1x512xf32>
    %7 = vector.broadcast %6 : vector<1x512xf32> to vector<8x512xf32>
    %8 = arith.addf %5, %7 : vector<8x512xf32>
    %cst_7 = arith.constant 0.000000e+00 : f32
    %9 = vector.broadcast %cst_7 : f32 to vector<8x512xf32>
    %10 = arith.cmpf oge, %8, %9 : vector<8x512xf32>
    %cst_8 = arith.constant 0.00999999977 : f32
    %11 = vector.broadcast %cst_8 : f32 to vector<8x512xf32>
    %12 = arith.mulf %11, %8 : vector<8x512xf32>
    %13 = arith.select %10, %8, %12 : vector<8x512xi1>, vector<8x512xf32>
    %14 = vector.extract_strided_slice %13 {offsets = [0, 0], sizes = [8, 256], strides = [1, 1]} : vector<8x512xf32> to vector<8x256xf32>
    %c0_9 = arith.constant 0 : index
    %c0_10 = arith.constant 0 : index
    %15 = vector.load %arg5[%c0_9, %c0_10] : memref<8x256xf32, #tpu.memory_space<vmem>>, vector<8x256xf32>
    tpu.vector_store %arg5[%c0_9, %c0_10], %14 {strides = array<i32>} : memref<8x256xf32, #tpu.memory_space<vmem>>, vector<8x256xf32>,
    %16 = vector.extract_strided_slice %13 {offsets = [0, 256], sizes = [8, 256], strides = [1, 1]} : vector<8x512xf32> to vector<8x256xf32>
    %c0_11 = arith.constant 0 : index
    %c0_12 = arith.constant 0 : index
    %17 = vector.load %arg6[%c0_11, %c0_12] : memref<8x256xf32, #tpu.memory_space<vmem>>, vector<8x256xf32>
    tpu.vector_store %arg6[%c0_11, %c0_12], %16 {strides = array<i32>} : memref<8x256xf32, #tpu.memory_space<vmem>>, vector<8x256xf32>,
    return
  }
  func.func @transform_0(%arg0: i32) -> (i32, i32) {
    %c0_i32 = arith.constant 0 : i32
    %c0_i32_0 = arith.constant 0 : i32
    return %arg0, %c0_i32 : i32, i32
  }
  func.func @transform_1(%arg0: i32) -> (i32, i32) {
    %c0_i32 = arith.constant 0 : i32
    %c0_i32_0 = arith.constant 0 : i32
    %c0_i32_1 = arith.constant 0 : i32
    return %c0_i32, %c0_i32_0 : i32, i32
  }
  func.func @transform_2(%arg0: i32) -> (i32, i32) {
    %c0_i32 = arith.constant 0 : i32
    %c0_i32_0 = arith.constant 0 : i32
    %c0_i32_1 = arith.constant 0 : i32
    return %c0_i32, %c0_i32_0 : i32, i32
  }
  func.func @transform_3(%arg0: i32) -> (i32, i32) {
    %c0_i32 = arith.constant 0 : i32
    %c0_i32_0 = arith.constant 0 : i32
    %c0_i32_1 = arith.constant 0 : i32
    return %c0_i32, %c0_i32_0 : i32, i32
  }
  func.func @transform_4(%arg0: i32) -> (i32, i32) {
    %c0_i32 = arith.constant 0 : i32
    %c0_i32_0 = arith.constant 0 : i32
    return %arg0, %c0_i32 : i32, i32
  }
  func.func @transform_5(%arg0: i32) -> (i32, i32) {
    %c0_i32 = arith.constant 0 : i32
    %c0_i32_0 = arith.constant 0 : i32
    return %arg0, %c0_i32 : i32, i32
  }
}

</mosaic_0001>

<llo_original>
// kernel: tpu_custom_call.1
$region0: #{tpu_custom_call.1}
  #allocation0 [shape = 'u32[]', space=smem, size = 0x4, offset = 0x4, fixed_abs, tag = 'smem constant byte address 0x4 - core index']
  #allocation1 [shape = 'u32[144,128]{1,0:T(1,128)}', space=vmem, size = 0x12000, scoped, tag = 'internal scratch']
  %s0 = inlined_call_operand.hbm [shape: f32[8,2048], index: 0, kind: input, shape index: {}]
  %s1 = inlined_call_operand.hbm [shape: f32[2048,512], index: 1, kind: input, shape index: {}]
  %s2 = inlined_call_operand.hbm [shape: f32[1,512], index: 2, kind: input, shape index: {}]
  %s3 = inlined_call_operand.hbm [shape: f32[1,512], index: 3, kind: input, shape index: {}]
  %s4 = inlined_call_operand.hbm [shape: f32[8,256], index: 4, kind: output, shape index: {0}]
  %s5 = inlined_call_operand.hbm [shape: f32[8,256], index: 5, kind: output, shape index: {1}]
  %6 = xla_tuple %s4, %s5
  %s7 = sld [smem:[#allocation0]]
  $region50: #{tpu_custom_call.1} parent=0
    _
  %s9 = ssub.s32 1, %s7
  %s10 = scalar_select 0, %s9, %s7
  $region1: #{tpu_custom_call.1} parent=0
    #allocation2 [shape = 'u8[65536]{0}', space=vmem, size = 0x10000, scoped, tag = 'input window, operand 0, single buffered']
    #allocation3 [shape = 's32[1]{0}', space=sflag, size = 0x4, scoped, tag = 'scoped memory for tpu_custom_call.1']
    #allocation4 [shape = 's32[1]{0}', space=sflag, size = 0x4, scoped, tag = 'scoped memory for tpu_custom_call.1']
    #allocation5 [shape = 'u8[4194304]{0}', space=vmem, size = 0x400000, scoped, tag = 'input window, operand 1, single buffered']
    #allocation6 [shape = 's32[1]{0}', space=sflag, size = 0x4, scoped, tag = 'scoped memory for tpu_custom_call.1']
    #allocation7 [shape = 'u8[2048]{0}', space=vmem, size = 0x800, scoped, tag = 'input window, operand 2, single buffered']
    #allocation8 [shape = 'u8[2048]{0}', space=vmem, size = 0x800, scoped, tag = 'input window, operand 3, single buffered']
    #allocation9 [shape = 's32[1]{0}', space=sflag, size = 0x4, scoped, tag = 'scoped memory for tpu_custom_call.1']
    #allocation10 [shape = 'u8[8192]{0}', space=vmem, size = 0x2000, scoped, tag = 'output window, operand 0, single buffered']
    #allocation11 [shape = 'u8[8192]{0}', space=vmem, size = 0x2000, scoped, tag = 'output window, operand 1, single buffered']
    #allocation12 [shape = 's32[1]{0}', space=sflag, size = 0x4, scoped, tag = 'scoped memory for tpu_custom_call.1']
    %11 = vsyncpa [#allocation3], 0
    %12 = vsyncpa [#allocation6], 0
    %13 = vsyncpa [#allocation9], 0
    %14 = vsyncpa [#allocation4], 0
    %15 = vsyncpa [#allocation12], 0
    // Predicated region
    $region2: #{tpu_custom_call.1} parent=1 // pred_check
      _
    $region3: #{tpu_custom_call.1} parent=1 // pred_check_branch
      %17 = sbr.rel (0) target = $region5
    $region4: #{tpu_custom_call.1} parent=1 // pred_region
      %s19 = ssub.s32 2048, 2048
      %20 = vsyncadd [#allocation3], %s19
      %s22 = sshll.u32 [#allocation2], 4
      %s23 = int_to_ptr.vmem [resolvable:$true] %s22
      %25 = dma.hbm_to_vmem [thread:$0]  %s0, 2048, %s23, [#allocation3]
    $region5: #{tpu_custom_call.1} parent=1 // pred_fallthru
      _
    // Predicated region
    $region6: #{tpu_custom_call.1} parent=1 // pred_check
      _
    $region7: #{tpu_custom_call.1} parent=1 // pred_check_branch
      %27 = sbr.rel (0) target = $region9
    $region8: #{tpu_custom_call.1} parent=1 // pred_region
      %s29 = ssub.s32 131072, 131072
      %30 = vsyncadd [#allocation6], %s29
      %s31 = sshll.u32 [#allocation5], 4
      %s32 = int_to_ptr.vmem [resolvable:$true] %s31
      %37 = dma.hbm_to_vmem [thread:$0]  %s1, 131072, %s32, [#allocation6], 512, 512, 32
    $region9: #{tpu_custom_call.1} parent=1 // pred_fallthru
      _
    // Predicated region
    $region10: #{tpu_custom_call.1} parent=1 // pred_check
      _
    $region11: #{tpu_custom_call.1} parent=1 // pred_check_branch
      %39 = sbr.rel (0) target = $region13
    $region12: #{tpu_custom_call.1} parent=1 // pred_region
      %s41 = ssub.s32 64, 64
      %42 = vsyncadd [#allocation6], %s41
      %s44 = sshll.u32 [#allocation7], 4
      %s45 = int_to_ptr.vmem [resolvable:$true] %s44
      %47 = dma.hbm_to_vmem [thread:$0]  %s2, 64, %s45, [#allocation6]
    $region13: #{tpu_custom_call.1} parent=1 // pred_fallthru
      _
    // Predicated region
    $region14: #{tpu_custom_call.1} parent=1 // pred_check
      _
    $region15: #{tpu_custom_call.1} parent=1 // pred_check_branch
      %49 = sbr.rel (0) target = $region17
    $region16: #{tpu_custom_call.1} parent=1 // pred_region
      %s51 = ssub.s32 64, 64
      %52 = vsyncadd [#allocation9], %s51
      %s54 = sshll.u32 [#allocation8], 4
      %s55 = int_to_ptr.vmem [resolvable:$true] %s54
      %57 = dma.hbm_to_vmem [thread:$0]  %s3, 64, %s55, [#allocation9]
    $region17: #{tpu_custom_call.1} parent=1 // pred_fallthru
      _
    // Predicated region
    $region18: #{tpu_custom_call.1} parent=1 // pred_check
      _
    $region19: #{tpu_custom_call.1} parent=1 // pred_check_branch
      %59 = sbr.rel (0) target = $region21
    $region20: #{tpu_custom_call.1} parent=1 // pred_region
      %60 = dma.done [#allocation3], 2048
    $region21: #{tpu_custom_call.1} parent=1 // pred_fallthru
      _
    // Predicated region
    $region22: #{tpu_custom_call.1} parent=1 // pred_check
      _
    $region23: #{tpu_custom_call.1} parent=1 // pred_check_branch
      %62 = sbr.rel (0) target = $region25
    $region24: #{tpu_custom_call.1} parent=1 // pred_region
      %63 = dma.done [#allocation6], 131072
    $region25: #{tpu_custom_call.1} parent=1 // pred_fallthru
      _
    // Predicated region
    $region26: #{tpu_custom_call.1} parent=1 // pred_check
      _
    $region27: #{tpu_custom_call.1} parent=1 // pred_check_branch
      %65 = sbr.rel (0) target = $region29
    $region28: #{tpu_custom_call.1} parent=1 // pred_region
      %66 = dma.done [#allocation6], 64
    $region29: #{tpu_custom_call.1} parent=1 // pred_fallthru
      _
    // Predicated region
    $region30: #{tpu_custom_call.1} parent=1 // pred_check
      _
    $region31: #{tpu_custom_call.1} parent=1 // pred_check_branch
      %68 = sbr.rel (0) target = $region33
    $region32: #{tpu_custom_call.1} parent=1 // pred_region
      %69 = dma.done [#allocation9], 64
    $region33: #{tpu_custom_call.1} parent=1 // pred_fallthru
      _
    %v70 = vld [vmem:[#allocation2] sm:$0xff]
    %v71 = vld [vmem:[#allocation2 + $0x8] sm:$0xff]
    %v72 = vld [vmem:[#allocation2 + $0x10] sm:$0xff]
    %v73 = vld [vmem:[#allocation2 + $0x18] sm:$0xff]
    %v74 = vld [vmem:[#allocation2 + $0x20] sm:$0xff]
    %v75 = vld [vmem:[#allocation2 + $0x28] sm:$0xff]
    %v76 = vld [vmem:[#allocation2 + $0x30] sm:$0xff]
    %v77 = vld [vmem:[#allocation2 + $0x38] sm:$0xff]
    %v78 = vld [vmem:[#allocation2 + $0x40] sm:$0xff]
    %v79 = vld [vmem:[#allocation2 + $0x48] sm:$0xff]
    %v80 = vld [vmem:[#allocation2 + $0x50] sm:$0xff]
    %v81 = vld [vmem:[#allocation2 + $0x58] sm:$0xff]
    %v82 = vld [vmem:[#allocation2 + $0x60] sm:$0xff]
    %v83 = vld [vmem:[#allocation2 + $0x68] sm:$0xff]
    %v84 = vld [vmem:[#allocation2 + $0x70] sm:$0xff]
    %v85 = vld [vmem:[#allocation2 + $0x78] sm:$0xff]
    %v86 = vld [vmem:[#allocation5] sm:$0xff]
    %v87 = vld [vmem:[#allocation5 + $0x8] sm:$0xff]
    %v88 = vld [vmem:[#allocation5 + $0x10] sm:$0xff]
    %v89 = vld [vmem:[#allocation5 + $0x18] sm:$0xff]
    %v90 = vld [vmem:[#allocation5 + $0x20] sm:$0xff]
    %v91 = vld [vmem:[#allocation5 + $0x28] sm:$0xff]
    %v92 = vld [vmem:[#allocation5 + $0x30] sm:$0xff]
    %v93 = vld [vmem:[#allocation5 + $0x38] sm:$0xff]
    %v94 = vld [vmem:[#allocation5 + $0x40] sm:$0xff]
    %v95 = vld [vmem:[#allocation5 + $0x48] sm:$0xff]
    %v96 = vld [vmem:[#allocation5 + $0x50] sm:$0xff]
    %v97 = vld [vmem:[#allocation5 + $0x58] sm:$0xff]
    %v98 = vld [vmem:[#allocation5 + $0x60] sm:$0xff]
    %v99 = vld [vmem:[#allocation5 + $0x68] sm:$0xff]
    %v100 = vld [vmem:[#allocation5 + $0x70] sm:$0xff]
    %v101 = vld [vmem:[#allocation5 + $0x78] sm:$0xff]
    %v102 = vld [vmem:[#allocation5 + $0x80] sm:$0xff]
    %v103 = vld [vmem:[#allocation5 + $0x88] sm:$0xff]
    %v104 = vld [vmem:[#allocation5 + $0x90] sm:$0xff]
    %v105 = vld [vmem:[#allocation5 + $0x98] sm:$0xff]
    %v106 = vld [vmem:[#allocation5 + $0xa0] sm:$0xff]
    %v107 = vld [vmem:[#allocation5 + $0xa8] sm:$0xff]
    %v108 = vld [vmem:[#allocation5 + $0xb0] sm:$0xff]
    %v109 = vld [vmem:[#allocation5 + $0xb8] sm:$0xff]
    %v110 = vld [vmem:[#allocation5 + $0xc0] sm:$0xff]
    %v111 = vld [vmem:[#allocation5 + $0xc8] sm:$0xff]
    %v112 = vld [vmem:[#allocation5 + $0xd0] sm:$0xff]
    %v113 = vld [vmem:[#allocation5 + $0xd8] sm:$0xff]
    %v114 = vld [vmem:[#allocation5 + $0xe0] sm:$0xff]
    %v115 = vld [vmem:[#allocation5 + $0xe8] sm:$0xff]
    %v116 = vld [vmem:[#allocation5 + $0xf0] sm:$0xff]
    %v117 = vld [vmem:[#allocation5 + $0xf8] sm:$0xff]
    %v118 = vld [vmem:[#allocation5 + $0x100] sm:$0xff]
    %v119 = vld [vmem:[#allocation5 + $0x108] sm:$0xff]
    %v120 = vld [vmem:[#allocation5 + $0x110] sm:$0xff]
    %v121 = vld [vmem:[#allocation5 + $0x118] sm:$0xff]
    %v122 = vld [vmem:[#allocation5 + $0x120] sm:$0xff]
    %v123 = vld [vmem:[#allocation5 + $0x128] sm:$0xff]
    %v124 = vld [vmem:[#allocation5 + $0x130] sm:$0xff]
    %v125 = vld [vmem:[#allocation5 + $0x138] sm:$0xff]
    %v126 = vld [vmem:[#allocation5 + $0x140] sm:$0xff]
    %v127 = vld [vmem:[#allocation5 + $0x148] sm:$0xff]
    %v128 = vld [vmem:[#allocation5 + $0x150] sm:$0xff]
    %v129 = vld [vmem:[#allocation5 + $0x158] sm:$0xff]
    %v130 = vld [vmem:[#allocation5 + $0x160] sm:$0xff]
    %v131 = vld [vmem:[#allocation5 + $0x168] sm:$0xff]
    %v132 = vld [vmem:[#allocation5 + $0x170] sm:$0xff]
    %v133 = vld [vmem:[#allocation5 + $0x178] sm:$0xff]
    %v134 = vld [vmem:[#allocation5 + $0x180] sm:$0xff]
    %v135 = vld [vmem:[#allocation5 + $0x188] sm:$0xff]
    %v136 = vld [vmem:[#allocation5 + $0x190] sm:$0xff]
    %v137 = vld [vmem:[#allocation5 + $0x198] sm:$0xff]
    %v138 = vld [vmem:[#allocation5 + $0x1a0] sm:$0xff]
    %v139 = vld [vmem:[#allocation5 + $0x1a8] sm:$0xff]
    %v140 = vld [vmem:[#allocation5 + $0x1b0] sm:$0xff]
    %v141 = vld [vmem:[#allocation5 + $0x1b8] sm:$0xff]
    %v142 = vld [vmem:[#allocation5 + $0x1c0] sm:$0xff]
    %v143 = vld [vmem:[#allocation5 + $0x1c8] sm:$0xff]
    %v144 = vld [vmem:[#allocation5 + $0x1d0] sm:$0xff]
    %v145 = vld [vmem:[#allocation5 + $0x1d8] sm:$0xff]
    %v146 = vld [vmem:[#allocation5 + $0x1e0] sm:$0xff]
    %v147 = vld [vmem:[#allocation5 + $0x1e8] sm:$0xff]
    %v148 = vld [vmem:[#allocation5 + $0x1f0] sm:$0xff]
    %v149 = vld [vmem:[#allocation5 + $0x1f8] sm:$0xff]
    %v150 = vld [vmem:[#allocation5 + $0x200] sm:$0xff]
    %v151 = vld [vmem:[#allocation5 + $0x208] sm:$0xff]
    %v152 = vld [vmem:[#allocation5 + $0x210] sm:$0xff]
    %v153 = vld [vmem:[#allocation5 + $0x218] sm:$0xff]
    %v154 = vld [vmem:[#allocation5 + $0x220] sm:$0xff]
    %v155 = vld [vmem:[#allocation5 + $0x228] sm:$0xff]
    %v156 = vld [vmem:[#allocation5 + $0x230] sm:$0xff]
    %v157 = vld [vmem:[#allocation5 + $0x238] sm:$0xff]
    %v158 = vld [vmem:[#allocation5 + $0x240] sm:$0xff]
    %v159 = vld [vmem:[#allocation5 + $0x248] sm:$0xff]
    %v160 = vld [vmem:[#allocation5 + $0x250] sm:$0xff]
    %v161 = vld [vmem:[#allocation5 + $0x258] sm:$0xff]
    %v162 = vld [vmem:[#allocation5 + $0x260] sm:$0xff]
    %v163 = vld [vmem:[#allocation5 + $0x268] sm:$0xff]
    %v164 = vld [vmem:[#allocation5 + $0x270] sm:$0xff]
    %v165 = vld [vmem:[#allocation5 + $0x278] sm:$0xff]
    %v166 = vld [vmem:[#allocation5 + $0x280] sm:$0xff]
    %v167 = vld [vmem:[#allocation5 + $0x288] sm:$0xff]
    %v168 = vld [vmem:[#allocation5 + $0x290] sm:$0xff]
    %v169 = vld [vmem:[#allocation5 + $0x298] sm:$0xff]
    %v170 = vld [vmem:[#allocation5 + $0x2a0] sm:$0xff]
    %v171 = vld [vmem:[#allocation5 + $0x2a8] sm:$0xff]
    %v172 = vld [vmem:[#allocation5 + $0x2b0] sm:$0xff]
    %v173 = vld [vmem:[#allocation5 + $0x2b8] sm:$0xff]
    %v174 = vld [vmem:[#allocation5 + $0x2c0] sm:$0xff]
    %v175 = vld [vmem:[#allocation5 + $0x2c8] sm:$0xff]
    %v176 = vld [vmem:[#allocation5 + $0x2d0] sm:$0xff]
    %v177 = vld [vmem:[#allocation5 + $0x2d8] sm:$0xff]
    %v178 = vld [vmem:[#allocation5 + $0x2e0] sm:$0xff]
    %v179 = vld [vmem:[#allocation5 + $0x2e8] sm:$0xff]
    %v180 = vld [vmem:[#allocation5 + $0x2f0] sm:$0xff]
    %v181 = vld [vmem:[#allocation5 + $0x2f8] sm:$0xff]
    %v182 = vld [vmem:[#allocation5 + $0x300] sm:$0xff]
    %v183 = vld [vmem:[#allocation5 + $0x308] sm:$0xff]
    %v184 = vld [vmem:[#allocation5 + $0x310] sm:$0xff]
    %v185 = vld [vmem:[#allocation5 + $0x318] sm:$0xff]
    %v186 = vld [vmem:[#allocation5 + $0x320] sm:$0xff]
    %v187 = vld [vmem:[#allocation5 + $0x328] sm:$0xff]
    %v188 = vld [vmem:[#allocation5 + $0x330] sm:$0xff]
    %v189 = vld [vmem:[#allocation5 + $0x338] sm:$0xff]
    %v190 = vld [vmem:[#allocation5 + $0x340] sm:$0xff]
    %v191 = vld [vmem:[#allocation5 + $0x348] sm:$0xff]
    %v192 = vld [vmem:[#allocation5 + $0x350] sm:$0xff]
    %v193 = vld [vmem:[#allocation5 + $0x358] sm:$0xff]
    %v194 = vld [vmem:[#allocation5 + $0x360] sm:$0xff]
    %v195 = vld [vmem:[#allocation5 + $0x368] sm:$0xff]
    %v196 = vld [vmem:[#allocation5 + $0x370] sm:$0xff]
    %v197 = vld [vmem:[#allocation5 + $0x378] sm:$0xff]
    %v198 = vld [vmem:[#allocation5 + $0x380] sm:$0xff]
    %v199 = vld [vmem:[#allocation5 + $0x388] sm:$0xff]
    %v200 = vld [vmem:[#allocation5 + $0x390] sm:$0xff]
    %v201 = vld [vmem:[#allocation5 + $0x398] sm:$0xff]
    %v202 = vld [vmem:[#allocation5 + $0x3a0] sm:$0xff]
    %v203 = vld [vmem:[#allocation5 + $0x3a8] sm:$0xff]
    %v204 = vld [vmem:[#allocation5 + $0x3b0] sm:$0xff]
    %v205 = vld [vmem:[#allocation5 + $0x3b8] sm:$0xff]
    %v206 = vld [vmem:[#allocation5 + $0x3c0] sm:$0xff]
    %v207 = vld [vmem:[#allocation5 + $0x3c8] sm:$0xff]
    %v208 = vld [vmem:[#allocation5 + $0x3d0] sm:$0xff]
    %v209 = vld [vmem:[#allocation5 + $0x3d8] sm:$0xff]
    %v210 = vld [vmem:[#allocation5 + $0x3e0] sm:$0xff]
    %v211 = vld [vmem:[#allocation5 + $0x3e8] sm:$0xff]
    %v212 = vld [vmem:[#allocation5 + $0x3f0] sm:$0xff]
    %v213 = vld [vmem:[#allocation5 + $0x3f8] sm:$0xff]
    %v214 = vld [vmem:[#allocation5 + $0x400] sm:$0xff]
    %v215 = vld [vmem:[#allocation5 + $0x408] sm:$0xff]
    %v216 = vld [vmem:[#allocation5 + $0x410] sm:$0xff]
    %v217 = vld [vmem:[#allocation5 + $0x418] sm:$0xff]
    %v218 = vld [vmem:[#allocation5 + $0x420] sm:$0xff]
    %v219 = vld [vmem:[#allocation5 + $0x428] sm:$0xff]
    %v220 = vld [vmem:[#allocation5 + $0x430] sm:$0xff]
    %v221 = vld [vmem:[#allocation5 + $0x438] sm:$0xff]
    %v222 = vld [vmem:[#allocation5 + $0x440] sm:$0xff]
    %v223 = vld [vmem:[#allocation5 + $0x448] sm:$0xff]
    %v224 = vld [vmem:[#allocation5 + $0x450] sm:$0xff]
    %v225 = vld [vmem:[#allocation5 + $0x458] sm:$0xff]
    %v226 = vld [vmem:[#allocation5 + $0x460] sm:$0xff]
    %v227 = vld [vmem:[#allocation5 + $0x468] sm:$0xff]
    %v228 = vld [vmem:[#allocation5 + $0x470] sm:$0xff]
    %v229 = vld [vmem:[#allocation5 + $0x478] sm:$0xff]
    %v230 = vld [vmem:[#allocation5 + $0x480] sm:$0xff]
    %v231 = vld [vmem:[#allocation5 + $0x488] sm:$0xff]
    %v232 = vld [vmem:[#allocation5 + $0x490] sm:$0xff]
    %v233 = vld [vmem:[#allocation5 + $0x498] sm:$0xff]
    %v234 = vld [vmem:[#allocation5 + $0x4a0] sm:$0xff]
    %v235 = vld [vmem:[#allocation5 + $0x4a8] sm:$0xff]
    %v236 = vld [vmem:[#allocation5 + $0x4b0] sm:$0xff]
    %v237 = vld [vmem:[#allocation5 + $0x4b8] sm:$0xff]
    %v238 = vld [vmem:[#allocation5 + $0x4c0] sm:$0xff]
    %v239 = vld [vmem:[#allocation5 + $0x4c8] sm:$0xff]
    %v240 = vld [vmem:[#allocation5 + $0x4d0] sm:$0xff]
    %v241 = vld [vmem:[#allocation5 + $0x4d8] sm:$0xff]
    %v242 = vld [vmem:[#allocation5 + $0x4e0] sm:$0xff]
    %v243 = vld [vmem:[#allocation5 + $0x4e8] sm:$0xff]
    %v244 = vld [vmem:[#allocation5 + $0x4f0] sm:$0xff]
    %v245 = vld [vmem:[#allocation5 + $0x4f8] sm:$0xff]
    %v246 = vld [vmem:[#allocation5 + $0x500] sm:$0xff]
    %v247 = vld [vmem:[#allocation5 + $0x508] sm:$0xff]
    %v248 = vld [vmem:[#allocation5 + $0x510] sm:$0xff]
    %v249 = vld [vmem:[#allocation5 + $0x518] sm:$0xff]
    %v250 = vld [vmem:[#allocation5 + $0x520] sm:$0xff]
    %v251 = vld [vmem:[#allocation5 + $0x528] sm:$0xff]
    %v252 = vld [vmem:[#allocation5 + $0x530] sm:$0xff]
    %v253 = vld [vmem:[#allocation5 + $0x538] sm:$0xff]
    %v254 = vld [vmem:[#allocation5 + $0x540] sm:$0xff]
    %v255 = vld [vmem:[#allocation5 + $0x548] sm:$0xff]
    %v256 = vld [vmem:[#allocation5 + $0x550] sm:$0xff]
    %v257 = vld [vmem:[#allocation5 + $0x558] sm:$0xff]
    %v258 = vld [vmem:[#allocation5 + $0x560] sm:$0xff]
    %v259 = vld [vmem:[#allocation5 + $0x568] sm:$0xff]
    %v260 = vld [vmem:[#allocation5 + $0x570] sm:$0xff]
    %v261 = vld [vmem:[#allocation5 + $0x578] sm:$0xff]
    %v262 = vld [vmem:[#allocation5 + $0x580] sm:$0xff]
    %v263 = vld [vmem:[#allocation5 + $0x588] sm:$0xff]
    %v264 = vld [vmem:[#allocation5 + $0x590] sm:$0xff]
    %v265 = vld [vmem:[#allocation5 + $0x598] sm:$0xff]
    %v266 = vld [vmem:[#allocation5 + $0x5a0] sm:$0xff]
    %v267 = vld [vmem:[#allocation5 + $0x5a8] sm:$0xff]
    %v268 = vld [vmem:[#allocation5 + $0x5b0] sm:$0xff]
    %v269 = vld [vmem:[#allocation5 + $0x5b8] sm:$0xff]
    %v270 = vld [vmem:[#allocation5 + $0x5c0] sm:$0xff]
    %v271 = vld [vmem:[#allocation5 + $0x5c8] sm:$0xff]
    %v272 = vld [vmem:[#allocation5 + $0x5d0] sm:$0xff]
    %v273 = vld [vmem:[#allocation5 + $0x5d8] sm:$0xff]
    %v274 = vld [vmem:[#allocation5 + $0x5e0] sm:$0xff]
    %v275 = vld [vmem:[#allocation5 + $0x5e8] sm:$0xff]
    %v276 = vld [vmem:[#allocation5 + $0x5f0] sm:$0xff]
    %v277 = vld [vmem:[#allocation5 + $0x5f8] sm:$0xff]
    %v278 = vld [vmem:[#allocation5 + $0x600] sm:$0xff]
    %v279 = vld [vmem:[#allocation5 + $0x608] sm:$0xff]
    %v280 = vld [vmem:[#allocation5 + $0x610] sm:$0xff]
    %v281 = vld [vmem:[#allocation5 + $0x618] sm:$0xff]
    %v282 = vld [vmem:[#allocation5 + $0x620] sm:$0xff]
    %v283 = vld [vmem:[#allocation5 + $0x628] sm:$0xff]
    %v284 = vld [vmem:[#allocation5 + $0x630] sm:$0xff]
    %v285 = vld [vmem:[#allocation5 + $0x638] sm:$0xff]
    %v286 = vld [vmem:[#allocation5 + $0x640] sm:$0xff]
    %v287 = vld [vmem:[#allocation5 + $0x648] sm:$0xff]
    %v288 = vld [vmem:[#allocation5 + $0x650] sm:$0xff]
    %v289 = vld [vmem:[#allocation5 + $0x658] sm:$0xff]
    %v290 = vld [vmem:[#allocation5 + $0x660] sm:$0xff]
    %v291 = vld [vmem:[#allocation5 + $0x668] sm:$0xff]
    %v292 = vld [vmem:[#allocation5 + $0x670] sm:$0xff]
    %v293 = vld [vmem:[#allocation5 + $0x678] sm:$0xff]
    %v294 = vld [vmem:[#allocation5 + $0x680] sm:$0xff]
    %v295 = vld [vmem:[#allocation5 + $0x688] sm:$0xff]
    %v296 = vld [vmem:[#allocation5 + $0x690] sm:$0xff]
    %v297 = vld [vmem:[#allocation5 + $0x698] sm:$0xff]
    %v298 = vld [vmem:[#allocation5 + $0x6a0] sm:$0xff]
    %v299 = vld [vmem:[#allocation5 + $0x6a8] sm:$0xff]
    %v300 = vld [vmem:[#allocation5 + $0x6b0] sm:$0xff]
    %v301 = vld [vmem:[#allocation5 + $0x6b8] sm:$0xff]
    %v302 = vld [vmem:[#allocation5 + $0x6c0] sm:$0xff]
    %v303 = vld [vmem:[#allocation5 + $0x6c8] sm:$0xff]
    %v304 = vld [vmem:[#allocation5 + $0x6d0] sm:$0xff]
    %v305 = vld [vmem:[#allocation5 + $0x6d8] sm:$0xff]
    %v306 = vld [vmem:[#allocation5 + $0x6e0] sm:$0xff]
    %v307 = vld [vmem:[#allocation5 + $0x6e8] sm:$0xff]
    %v308 = vld [vmem:[#allocation5 + $0x6f0] sm:$0xff]
    %v309 = vld [vmem:[#allocation5 + $0x6f8] sm:$0xff]
    %v310 = vld [vmem:[#allocation5 + $0x700] sm:$0xff]
    %v311 = vld [vmem:[#allocation5 + $0x708] sm:$0xff]
    %v312 = vld [vmem:[#allocation5 + $0x710] sm:$0xff]
    %v313 = vld [vmem:[#allocation5 + $0x718] sm:$0xff]
    %v314 = vld [vmem:[#allocation5 + $0x720] sm:$0xff]
    %v315 = vld [vmem:[#allocation5 + $0x728] sm:$0xff]
    %v316 = vld [vmem:[#allocation5 + $0x730] sm:$0xff]
    %v317 = vld [vmem:[#allocation5 + $0x738] sm:$0xff]
    %v318 = vld [vmem:[#allocation5 + $0x740] sm:$0xff]
    %v319 = vld [vmem:[#allocation5 + $0x748] sm:$0xff]
    %v320 = vld [vmem:[#allocation5 + $0x750] sm:$0xff]
    %v321 = vld [vmem:[#allocation5 + $0x758] sm:$0xff]
    %v322 = vld [vmem:[#allocation5 + $0x760] sm:$0xff]
    %v323 = vld [vmem:[#allocation5 + $0x768] sm:$0xff]
    %v324 = vld [vmem:[#allocation5 + $0x770] sm:$0xff]
    %v325 = vld [vmem:[#allocation5 + $0x778] sm:$0xff]
    %v326 = vld [vmem:[#allocation5 + $0x780] sm:$0xff]
    %v327 = vld [vmem:[#allocation5 + $0x788] sm:$0xff]
    %v328 = vld [vmem:[#allocation5 + $0x790] sm:$0xff]
    %v329 = vld [vmem:[#allocation5 + $0x798] sm:$0xff]
    %v330 = vld [vmem:[#allocation5 + $0x7a0] sm:$0xff]
    %v331 = vld [vmem:[#allocation5 + $0x7a8] sm:$0xff]
    %v332 = vld [vmem:[#allocation5 + $0x7b0] sm:$0xff]
    %v333 = vld [vmem:[#allocation5 + $0x7b8] sm:$0xff]
    %v334 = vld [vmem:[#allocation5 + $0x7c0] sm:$0xff]
    %v335 = vld [vmem:[#allocation5 + $0x7c8] sm:$0xff]
    %v336 = vld [vmem:[#allocation5 + $0x7d0] sm:$0xff]
    %v337 = vld [vmem:[#allocation5 + $0x7d8] sm:$0xff]
    %v338 = vld [vmem:[#allocation5 + $0x7e0] sm:$0xff]
    %v339 = vld [vmem:[#allocation5 + $0x7e8] sm:$0xff]
    %v340 = vld [vmem:[#allocation5 + $0x7f0] sm:$0xff]
    %v341 = vld [vmem:[#allocation5 + $0x7f8] sm:$0xff]
    %v342 = vld [vmem:[#allocation5 + $0x800] sm:$0xff]
    %v343 = vld [vmem:[#allocation5 + $0x808] sm:$0xff]
    %v344 = vld [vmem:[#allocation5 + $0x810] sm:$0xff]
    %v345 = vld [vmem:[#allocation5 + $0x818] sm:$0xff]
    %v346 = vld [vmem:[#allocation5 + $0x820] sm:$0xff]
    %v347 = vld [vmem:[#allocation5 + $0x828] sm:$0xff]
    %v348 = vld [vmem:[#allocation5 + $0x830] sm:$0xff]
    %v349 = vld [vmem:[#allocation5 + $0x838] sm:$0xff]
    %v350 = vld [vmem:[#allocation5 + $0x840] sm:$0xff]
    %v351 = vld [vmem:[#allocation5 + $0x848] sm:$0xff]
    %v352 = vld [vmem:[#allocation5 + $0x850] sm:$0xff]
    %v353 = vld [vmem:[#allocation5 + $0x858] sm:$0xff]
    %v354 = vld [vmem:[#allocation5 + $0x860] sm:$0xff]
    %v355 = vld [vmem:[#allocation5 + $0x868] sm:$0xff]
    %v356 = vld [vmem:[#allocation5 + $0x870] sm:$0xff]
    %v357 = vld [vmem:[#allocation5 + $0x878] sm:$0xff]
    %v358 = vld [vmem:[#allocation5 + $0x880] sm:$0xff]
    %v359 = vld [vmem:[#allocation5 + $0x888] sm:$0xff]
    %v360 = vld [vmem:[#allocation5 + $0x890] sm:$0xff]
    %v361 = vld [vmem:[#allocation5 + $0x898] sm:$0xff]
    %v362 = vld [vmem:[#allocation5 + $0x8a0] sm:$0xff]
    %v363 = vld [vmem:[#allocation5 + $0x8a8] sm:$0xff]
    %v364 = vld [vmem:[#allocation5 + $0x8b0] sm:$0xff]
    %v365 = vld [vmem:[#allocation5 + $0x8b8] sm:$0xff]
    %v366 = vld [vmem:[#allocation5 + $0x8c0] sm:$0xff]
    %v367 = vld [vmem:[#allocation5 + $0x8c8] sm:$0xff]
    %v368 = vld [vmem:[#allocation5 + $0x8d0] sm:$0xff]
    %v369 = vld [vmem:[#allocation5 + $0x8d8] sm:$0xff]
    %v370 = vld [vmem:[#allocation5 + $0x8e0] sm:$0xff]
    %v371 = vld [vmem:[#allocation5 + $0x8e8] sm:$0xff]
    %v372 = vld [vmem:[#allocation5 + $0x8f0] sm:$0xff]
    %v373 = vld [vmem:[#allocation5 + $0x8f8] sm:$0xff]
    %v374 = vld [vmem:[#allocation5 + $0x900] sm:$0xff]
    %v375 = vld [vmem:[#allocation5 + $0x908] sm:$0xff]
    %v376 = vld [vmem:[#allocation5 + $0x910] sm:$0xff]
    %v377 = vld [vmem:[#allocation5 + $0x918] sm:$0xff]
    %v378 = vld [vmem:[#allocation5 + $0x920] sm:$0xff]
    %v379 = vld [vmem:[#allocation5 + $0x928] sm:$0xff]
    %v380 = vld [vmem:[#allocation5 + $0x930] sm:$0xff]
    %v381 = vld [vmem:[#allocation5 + $0x938] sm:$0xff]
    %v382 = vld [vmem:[#allocation5 + $0x940] sm:$0xff]
    %v383 = vld [vmem:[#allocation5 + $0x948] sm:$0xff]
    %v384 = vld [vmem:[#allocation5 + $0x950] sm:$0xff]
    %v385 = vld [vmem:[#allocation5 + $0x958] sm:$0xff]
    %v386 = vld [vmem:[#allocation5 + $0x960] sm:$0xff]
    %v387 = vld [vmem:[#allocation5 + $0x968] sm:$0xff]
    %v388 = vld [vmem:[#allocation5 + $0x970] sm:$0xff]
    %v389 = vld [vmem:[#allocation5 + $0x978] sm:$0xff]
    %v390 = vld [vmem:[#allocation5 + $0x980] sm:$0xff]
    %v391 = vld [vmem:[#allocation5 + $0x988] sm:$0xff]
    %v392 = vld [vmem:[#allocation5 + $0x990] sm:$0xff]
    %v393 = vld [vmem:[#allocation5 + $0x998] sm:$0xff]
    %v394 = vld [vmem:[#allocation5 + $0x9a0] sm:$0xff]
    %v395 = vld [vmem:[#allocation5 + $0x9a8] sm:$0xff]
    %v396 = vld [vmem:[#allocation5 + $0x9b0] sm:$0xff]
    %v397 = vld [vmem:[#allocation5 + $0x9b8] sm:$0xff]
    %v398 = vld [vmem:[#allocation5 + $0x9c0] sm:$0xff]
    %v399 = vld [vmem:[#allocation5 + $0x9c8] sm:$0xff]
    %v400 = vld [vmem:[#allocation5 + $0x9d0] sm:$0xff]
    %v401 = vld [vmem:[#allocation5 + $0x9d8] sm:$0xff]
    %v402 = vld [vmem:[#allocation5 + $0x9e0] sm:$0xff]
    %v403 = vld [vmem:[#allocation5 + $0x9e8] sm:$0xff]
    %v404 = vld [vmem:[#allocation5 + $0x9f0] sm:$0xff]
    %v405 = vld [vmem:[#allocation5 + $0x9f8] sm:$0xff]
    %v406 = vld [vmem:[#allocation5 + $0xa00] sm:$0xff]
    %v407 = vld [vmem:[#allocation5 + $0xa08] sm:$0xff]
    %v408 = vld [vmem:[#allocation5 + $0xa10] sm:$0xff]
    %v409 = vld [vmem:[#allocation5 + $0xa18] sm:$0xff]
    %v410 = vld [vmem:[#allocation5 + $0xa20] sm:$0xff]
    %v411 = vld [vmem:[#allocation5 + $0xa28] sm:$0xff]
    %v412 = vld [vmem:[#allocation5 + $0xa30] sm:$0xff]
    %v413 = vld [vmem:[#allocation5 + $0xa38] sm:$0xff]
    %v414 = vld [vmem:[#allocation5 + $0xa40] sm:$0xff]
    %v415 = vld [vmem:[#allocation5 + $0xa48] sm:$0xff]
    %v416 = vld [vmem:[#allocation5 + $0xa50] sm:$0xff]
    %v417 = vld [vmem:[#allocation5 + $0xa58] sm:$0xff]
    %v418 = vld [vmem:[#allocation5 + $0xa60] sm:$0xff]
    %v419 = vld [vmem:[#allocation5 + $0xa68] sm:$0xff]
    %v420 = vld [vmem:[#allocation5 + $0xa70] sm:$0xff]
    %v421 = vld [vmem:[#allocation5 + $0xa78] sm:$0xff]
    %v422 = vld [vmem:[#allocation5 + $0xa80] sm:$0xff]
    %v423 = vld [vmem:[#allocation5 + $0xa88] sm:$0xff]
    %v424 = vld [vmem:[#allocation5 + $0xa90] sm:$0xff]
    %v425 = vld [vmem:[#allocation5 + $0xa98] sm:$0xff]
    %v426 = vld [vmem:[#allocation5 + $0xaa0] sm:$0xff]
    %v427 = vld [vmem:[#allocation5 + $0xaa8] sm:$0xff]
    %v428 = vld [vmem:[#allocation5 + $0xab0] sm:$0xff]
    %v429 = vld [vmem:[#allocation5 + $0xab8] sm:$0xff]
    %v430 = vld [vmem:[#allocation5 + $0xac0] sm:$0xff]
    %v431 = vld [vmem:[#allocation5 + $0xac8] sm:$0xff]
    %v432 = vld [vmem:[#allocation5 + $0xad0] sm:$0xff]
    %v433 = vld [vmem:[#allocation5 + $0xad8] sm:$0xff]
    %v434 = vld [vmem:[#allocation5 + $0xae0] sm:$0xff]
    %v435 = vld [vmem:[#allocation5 + $0xae8] sm:$0xff]
    %v436 = vld [vmem:[#allocation5 + $0xaf0] sm:$0xff]
    %v437 = vld [vmem:[#allocation5 + $0xaf8] sm:$0xff]
    %v438 = vld [vmem:[#allocation5 + $0xb00] sm:$0xff]
    %v439 = vld [vmem:[#allocation5 + $0xb08] sm:$0xff]
    %v440 = vld [vmem:[#allocation5 + $0xb10] sm:$0xff]
    %v441 = vld [vmem:[#allocation5 + $0xb18] sm:$0xff]
    %v442 = vld [vmem:[#allocation5 + $0xb20] sm:$0xff]
    %v443 = vld [vmem:[#allocation5 + $0xb28] sm:$0xff]
    %v444 = vld [vmem:[#allocation5 + $0xb30] sm:$0xff]
    %v445 = vld [vmem:[#allocation5 + $0xb38] sm:$0xff]
    %v446 = vld [vmem:[#allocation5 + $0xb40] sm:$0xff]
    %v447 = vld [vmem:[#allocation5 + $0xb48] sm:$0xff]
    %v448 = vld [vmem:[#allocation5 + $0xb50] sm:$0xff]
    %v449 = vld [vmem:[#allocation5 + $0xb58] sm:$0xff]
    %v450 = vld [vmem:[#allocation5 + $0xb60] sm:$0xff]
    %v451 = vld [vmem:[#allocation5 + $0xb68] sm:$0xff]
    %v452 = vld [vmem:[#allocation5 + $0xb70] sm:$0xff]
    %v453 = vld [vmem:[#allocation5 + $0xb78] sm:$0xff]
    %v454 = vld [vmem:[#allocation5 + $0xb80] sm:$0xff]
    %v455 = vld [vmem:[#allocation5 + $0xb88] sm:$0xff]
    %v456 = vld [vmem:[#allocation5 + $0xb90] sm:$0xff]
    %v457 = vld [vmem:[#allocation5 + $0xb98] sm:$0xff]
    %v458 = vld [vmem:[#allocation5 + $0xba0] sm:$0xff]
    %v459 = vld [vmem:[#allocation5 + $0xba8] sm:$0xff]
    %v460 = vld [vmem:[#allocation5 + $0xbb0] sm:$0xff]
    %v461 = vld [vmem:[#allocation5 + $0xbb8] sm:$0xff]
    %v462 = vld [vmem:[#allocation5 + $0xbc0] sm:$0xff]
    %v463 = vld [vmem:[#allocation5 + $0xbc8] sm:$0xff]
    %v464 = vld [vmem:[#allocation5 + $0xbd0] sm:$0xff]
    %v465 = vld [vmem:[#allocation5 + $0xbd8] sm:$0xff]
    %v466 = vld [vmem:[#allocation5 + $0xbe0] sm:$0xff]
    %v467 = vld [vmem:[#allocation5 + $0xbe8] sm:$0xff]
    %v468 = vld [vmem:[#allocation5 + $0xbf0] sm:$0xff]
    %v469 = vld [vmem:[#allocation5 + $0xbf8] sm:$0xff]
    %v470 = vld [vmem:[#allocation5 + $0xc00] sm:$0xff]
    %v471 = vld [vmem:[#allocation5 + $0xc08] sm:$0xff]
    %v472 = vld [vmem:[#allocation5 + $0xc10] sm:$0xff]
    %v473 = vld [vmem:[#allocation5 + $0xc18] sm:$0xff]
    %v474 = vld [vmem:[#allocation5 + $0xc20] sm:$0xff]
    %v475 = vld [vmem:[#allocation5 + $0xc28] sm:$0xff]
    %v476 = vld [vmem:[#allocation5 + $0xc30] sm:$0xff]
    %v477 = vld [vmem:[#allocation5 + $0xc38] sm:$0xff]
    %v478 = vld [vmem:[#allocation5 + $0xc40] sm:$0xff]
    %v479 = vld [vmem:[#allocation5 + $0xc48] sm:$0xff]
    %v480 = vld [vmem:[#allocation5 + $0xc50] sm:$0xff]
    %v481 = vld [vmem:[#allocation5 + $0xc58] sm:$0xff]
    %v482 = vld [vmem:[#allocation5 + $0xc60] sm:$0xff]
    %v483 = vld [vmem:[#allocation5 + $0xc68] sm:$0xff]
    %v484 = vld [vmem:[#allocation5 + $0xc70] sm:$0xff]
    %v485 = vld [vmem:[#allocation5 + $0xc78] sm:$0xff]
    %v486 = vld [vmem:[#allocation5 + $0xc80] sm:$0xff]
    %v487 = vld [vmem:[#allocation5 + $0xc88] sm:$0xff]
    %v488 = vld [vmem:[#allocation5 + $0xc90] sm:$0xff]
    %v489 = vld [vmem:[#allocation5 + $0xc98] sm:$0xff]
    %v490 = vld [vmem:[#allocation5 + $0xca0] sm:$0xff]
    %v491 = vld [vmem:[#allocation5 + $0xca8] sm:$0xff]
    %v492 = vld [vmem:[#allocation5 + $0xcb0] sm:$0xff]
    %v493 = vld [vmem:[#allocation5 + $0xcb8] sm:$0xff]
    %v494 = vld [vmem:[#allocation5 + $0xcc0] sm:$0xff]
    %v495 = vld [vmem:[#allocation5 + $0xcc8] sm:$0xff]
    %v496 = vld [vmem:[#allocation5 + $0xcd0] sm:$0xff]
    %v497 = vld [vmem:[#allocation5 + $0xcd8] sm:$0xff]
    %v498 = vld [vmem:[#allocation5 + $0xce0] sm:$0xff]
    %v499 = vld [vmem:[#allocation5 + $0xce8] sm:$0xff]
    %v500 = vld [vmem:[#allocation5 + $0xcf0] sm:$0xff]
    %v501 = vld [vmem:[#allocation5 + $0xcf8] sm:$0xff]
    %v502 = vld [vmem:[#allocation5 + $0xd00] sm:$0xff]
    %v503 = vld [vmem:[#allocation5 + $0xd08] sm:$0xff]
    %v504 = vld [vmem:[#allocation5 + $0xd10] sm:$0xff]
    %v505 = vld [vmem:[#allocation5 + $0xd18] sm:$0xff]
    %v506 = vld [vmem:[#allocation5 + $0xd20] sm:$0xff]
    %v507 = vld [vmem:[#allocation5 + $0xd28] sm:$0xff]
    %v508 = vld [vmem:[#allocation5 + $0xd30] sm:$0xff]
    %v509 = vld [vmem:[#allocation5 + $0xd38] sm:$0xff]
    %v510 = vld [vmem:[#allocation5 + $0xd40] sm:$0xff]
    %v511 = vld [vmem:[#allocation5 + $0xd48] sm:$0xff]
    %v512 = vld [vmem:[#allocation5 + $0xd50] sm:$0xff]
    %v513 = vld [vmem:[#allocation5 + $0xd58] sm:$0xff]
    %v514 = vld [vmem:[#allocation5 + $0xd60] sm:$0xff]
    %v515 = vld [vmem:[#allocation5 + $0xd68] sm:$0xff]
    %v516 = vld [vmem:[#allocation5 + $0xd70] sm:$0xff]
    %v517 = vld [vmem:[#allocation5 + $0xd78] sm:$0xff]
    %v518 = vld [vmem:[#allocation5 + $0xd80] sm:$0xff]
    %v519 = vld [vmem:[#allocation5 + $0xd88] sm:$0xff]
    %v520 = vld [vmem:[#allocation5 + $0xd90] sm:$0xff]
    %v521 = vld [vmem:[#allocation5 + $0xd98] sm:$0xff]
    %v522 = vld [vmem:[#allocation5 + $0xda0] sm:$0xff]
    %v523 = vld [vmem:[#allocation5 + $0xda8] sm:$0xff]
    %v524 = vld [vmem:[#allocation5 + $0xdb0] sm:$0xff]
    %v525 = vld [vmem:[#allocation5 + $0xdb8] sm:$0xff]
    %v526 = vld [vmem:[#allocation5 + $0xdc0] sm:$0xff]
    %v527 = vld [vmem:[#allocation5 + $0xdc8] sm:$0xff]
    %v528 = vld [vmem:[#allocation5 + $0xdd0] sm:$0xff]
    %v529 = vld [vmem:[#allocation5 + $0xdd8] sm:$0xff]
    %v530 = vld [vmem:[#allocation5 + $0xde0] sm:$0xff]
    %v531 = vld [vmem:[#allocation5 + $0xde8] sm:$0xff]
    %v532 = vld [vmem:[#allocation5 + $0xdf0] sm:$0xff]
    %v533 = vld [vmem:[#allocation5 + $0xdf8] sm:$0xff]
    %v534 = vld [vmem:[#allocation5 + $0xe00] sm:$0xff]
    %v535 = vld [vmem:[#allocation5 + $0xe08] sm:$0xff]
    %v536 = vld [vmem:[#allocation5 + $0xe10] sm:$0xff]
    %v537 = vld [vmem:[#allocation5 + $0xe18] sm:$0xff]
    %v538 = vld [vmem:[#allocation5 + $0xe20] sm:$0xff]
    %v539 = vld [vmem:[#allocation5 + $0xe28] sm:$0xff]
    %v540 = vld [vmem:[#allocation5 + $0xe30] sm:$0xff]
    %v541 = vld [vmem:[#allocation5 + $0xe38] sm:$0xff]
    %v542 = vld [vmem:[#allocation5 + $0xe40] sm:$0xff]
    %v543 = vld [vmem:[#allocation5 + $0xe48] sm:$0xff]
    %v544 = vld [vmem:[#allocation5 + $0xe50] sm:$0xff]
    %v545 = vld [vmem:[#allocation5 + $0xe58] sm:$0xff]
    %v546 = vld [vmem:[#allocation5 + $0xe60] sm:$0xff]
    %v547 = vld [vmem:[#allocation5 + $0xe68] sm:$0xff]
    %v548 = vld [vmem:[#allocation5 + $0xe70] sm:$0xff]
    %v549 = vld [vmem:[#allocation5 + $0xe78] sm:$0xff]
    %v550 = vld [vmem:[#allocation5 + $0xe80] sm:$0xff]
    %v551 = vld [vmem:[#allocation5 + $0xe88] sm:$0xff]
    %v552 = vld [vmem:[#allocation5 + $0xe90] sm:$0xff]
    %v553 = vld [vmem:[#allocation5 + $0xe98] sm:$0xff]
    %v554 = vld [vmem:[#allocation5 + $0xea0] sm:$0xff]
    %v555 = vld [vmem:[#allocation5 + $0xea8] sm:$0xff]
    %v556 = vld [vmem:[#allocation5 + $0xeb0] sm:$0xff]
    %v557 = vld [vmem:[#allocation5 + $0xeb8] sm:$0xff]
    %v558 = vld [vmem:[#allocation5 + $0xec0] sm:$0xff]
    %v559 = vld [vmem:[#allocation5 + $0xec8] sm:$0xff]
    %v560 = vld [vmem:[#allocation5 + $0xed0] sm:$0xff]
    %v561 = vld [vmem:[#allocation5 + $0xed8] sm:$0xff]
    %v562 = vld [vmem:[#allocation5 + $0xee0] sm:$0xff]
    %v563 = vld [vmem:[#allocation5 + $0xee8] sm:$0xff]
    %v564 = vld [vmem:[#allocation5 + $0xef0] sm:$0xff]
    %v565 = vld [vmem:[#allocation5 + $0xef8] sm:$0xff]
    %v566 = vld [vmem:[#allocation5 + $0xf00] sm:$0xff]
    %v567 = vld [vmem:[#allocation5 + $0xf08] sm:$0xff]
    %v568 = vld [vmem:[#allocation5 + $0xf10] sm:$0xff]
    %v569 = vld [vmem:[#allocation5 + $0xf18] sm:$0xff]
    %v570 = vld [vmem:[#allocation5 + $0xf20] sm:$0xff]
    %v571 = vld [vmem:[#allocation5 + $0xf28] sm:$0xff]
    %v572 = vld [vmem:[#allocation5 + $0xf30] sm:$0xff]
    %v573 = vld [vmem:[#allocation5 + $0xf38] sm:$0xff]
    %v574 = vld [vmem:[#allocation5 + $0xf40] sm:$0xff]
    %v575 = vld [vmem:[#allocation5 + $0xf48] sm:$0xff]
    %v576 = vld [vmem:[#allocation5 + $0xf50] sm:$0xff]
    %v577 = vld [vmem:[#allocation5 + $0xf58] sm:$0xff]
    %v578 = vld [vmem:[#allocation5 + $0xf60] sm:$0xff]
    %v579 = vld [vmem:[#allocation5 + $0xf68] sm:$0xff]
    %v580 = vld [vmem:[#allocation5 + $0xf70] sm:$0xff]
    %v581 = vld [vmem:[#allocation5 + $0xf78] sm:$0xff]
    %v582 = vld [vmem:[#allocation5 + $0xf80] sm:$0xff]
    %v583 = vld [vmem:[#allocation5 + $0xf88] sm:$0xff]
    %v584 = vld [vmem:[#allocation5 + $0xf90] sm:$0xff]
    %v585 = vld [vmem:[#allocation5 + $0xf98] sm:$0xff]
    %v586 = vld [vmem:[#allocation5 + $0xfa0] sm:$0xff]
    %v587 = vld [vmem:[#allocation5 + $0xfa8] sm:$0xff]
    %v588 = vld [vmem:[#allocation5 + $0xfb0] sm:$0xff]
    %v589 = vld [vmem:[#allocation5 + $0xfb8] sm:$0xff]
    %v590 = vld [vmem:[#allocation5 + $0xfc0] sm:$0xff]
    %v591 = vld [vmem:[#allocation5 + $0xfc8] sm:$0xff]
    %v592 = vld [vmem:[#allocation5 + $0xfd0] sm:$0xff]
    %v593 = vld [vmem:[#allocation5 + $0xfd8] sm:$0xff]
    %v594 = vld [vmem:[#allocation5 + $0xfe0] sm:$0xff]
    %v595 = vld [vmem:[#allocation5 + $0xfe8] sm:$0xff]
    %v596 = vld [vmem:[#allocation5 + $0xff0] sm:$0xff]
    %v597 = vld [vmem:[#allocation5 + $0xff8] sm:$0xff]
    %v598 = vld [vmem:[#allocation5 + $0x1000] sm:$0xff]
    %v599 = vld [vmem:[#allocation5 + $0x1008] sm:$0xff]
    %v600 = vld [vmem:[#allocation5 + $0x1010] sm:$0xff]
    %v601 = vld [vmem:[#allocation5 + $0x1018] sm:$0xff]
    %v602 = vld [vmem:[#allocation5 + $0x1020] sm:$0xff]
    %v603 = vld [vmem:[#allocation5 + $0x1028] sm:$0xff]
    %v604 = vld [vmem:[#allocation5 + $0x1030] sm:$0xff]
    %v605 = vld [vmem:[#allocation5 + $0x1038] sm:$0xff]
    %v606 = vld [vmem:[#allocation5 + $0x1040] sm:$0xff]
    %v607 = vld [vmem:[#allocation5 + $0x1048] sm:$0xff]
    %v608 = vld [vmem:[#allocation5 + $0x1050] sm:$0xff]
    %v609 = vld [vmem:[#allocation5 + $0x1058] sm:$0xff]
    %v610 = vld [vmem:[#allocation5 + $0x1060] sm:$0xff]
    %v611 = vld [vmem:[#allocation5 + $0x1068] sm:$0xff]
    %v612 = vld [vmem:[#allocation5 + $0x1070] sm:$0xff]
    %v613 = vld [vmem:[#allocation5 + $0x1078] sm:$0xff]
    %v614 = vld [vmem:[#allocation5 + $0x1080] sm:$0xff]
    %v615 = vld [vmem:[#allocation5 + $0x1088] sm:$0xff]
    %v616 = vld [vmem:[#allocation5 + $0x1090] sm:$0xff]
    %v617 = vld [vmem:[#allocation5 + $0x1098] sm:$0xff]
    %v618 = vld [vmem:[#allocation5 + $0x10a0] sm:$0xff]
    %v619 = vld [vmem:[#allocation5 + $0x10a8] sm:$0xff]
    %v620 = vld [vmem:[#allocation5 + $0x10b0] sm:$0xff]
    %v621 = vld [vmem:[#allocation5 + $0x10b8] sm:$0xff]
    %v622 = vld [vmem:[#allocation5 + $0x10c0] sm:$0xff]
    %v623 = vld [vmem:[#allocation5 + $0x10c8] sm:$0xff]
    %v624 = vld [vmem:[#allocation5 + $0x10d0] sm:$0xff]
    %v625 = vld [vmem:[#allocation5 + $0x10d8] sm:$0xff]
    %v626 = vld [vmem:[#allocation5 + $0x10e0] sm:$0xff]
    %v627 = vld [vmem:[#allocation5 + $0x10e8] sm:$0xff]
    %v628 = vld [vmem:[#allocation5 + $0x10f0] sm:$0xff]
    %v629 = vld [vmem:[#allocation5 + $0x10f8] sm:$0xff]
    %v630 = vld [vmem:[#allocation5 + $0x1100] sm:$0xff]
    %v631 = vld [vmem:[#allocation5 + $0x1108] sm:$0xff]
    %v632 = vld [vmem:[#allocation5 + $0x1110] sm:$0xff]
    %v633 = vld [vmem:[#allocation5 + $0x1118] sm:$0xff]
    %v634 = vld [vmem:[#allocation5 + $0x1120] sm:$0xff]
    %v635 = vld [vmem:[#allocation5 + $0x1128] sm:$0xff]
    %v636 = vld [vmem:[#allocation5 + $0x1130] sm:$0xff]
    %v637 = vld [vmem:[#allocation5 + $0x1138] sm:$0xff]
    %v638 = vld [vmem:[#allocation5 + $0x1140] sm:$0xff]
    %v639 = vld [vmem:[#allocation5 + $0x1148] sm:$0xff]
    %v640 = vld [vmem:[#allocation5 + $0x1150] sm:$0xff]
    %v641 = vld [vmem:[#allocation5 + $0x1158] sm:$0xff]
    %v642 = vld [vmem:[#allocation5 + $0x1160] sm:$0xff]
    %v643 = vld [vmem:[#allocation5 + $0x1168] sm:$0xff]
    %v644 = vld [vmem:[#allocation5 + $0x1170] sm:$0xff]
    %v645 = vld [vmem:[#allocation5 + $0x1178] sm:$0xff]
    %v646 = vld [vmem:[#allocation5 + $0x1180] sm:$0xff]
    %v647 = vld [vmem:[#allocation5 + $0x1188] sm:$0xff]
    %v648 = vld [vmem:[#allocation5 + $0x1190] sm:$0xff]
    %v649 = vld [vmem:[#allocation5 + $0x1198] sm:$0xff]
    %v650 = vld [vmem:[#allocation5 + $0x11a0] sm:$0xff]
    %v651 = vld [vmem:[#allocation5 + $0x11a8] sm:$0xff]
    %v652 = vld [vmem:[#allocation5 + $0x11b0] sm:$0xff]
    %v653 = vld [vmem:[#allocation5 + $0x11b8] sm:$0xff]
    %v654 = vld [vmem:[#allocation5 + $0x11c0] sm:$0xff]
    %v655 = vld [vmem:[#allocation5 + $0x11c8] sm:$0xff]
    %v656 = vld [vmem:[#allocation5 + $0x11d0] sm:$0xff]
    %v657 = vld [vmem:[#allocation5 + $0x11d8] sm:$0xff]
    %v658 = vld [vmem:[#allocation5 + $0x11e0] sm:$0xff]
    %v659 = vld [vmem:[#allocation5 + $0x11e8] sm:$0xff]
    %v660 = vld [vmem:[#allocation5 + $0x11f0] sm:$0xff]
    %v661 = vld [vmem:[#allocation5 + $0x11f8] sm:$0xff]
    %v662 = vld [vmem:[#allocation5 + $0x1200] sm:$0xff]
    %v663 = vld [vmem:[#allocation5 + $0x1208] sm:$0xff]
    %v664 = vld [vmem:[#allocation5 + $0x1210] sm:$0xff]
    %v665 = vld [vmem:[#allocation5 + $0x1218] sm:$0xff]
    %v666 = vld [vmem:[#allocation5 + $0x1220] sm:$0xff]
    %v667 = vld [vmem:[#allocation5 + $0x1228] sm:$0xff]
    %v668 = vld [vmem:[#allocation5 + $0x1230] sm:$0xff]
    %v669 = vld [vmem:[#allocation5 + $0x1238] sm:$0xff]
    %v670 = vld [vmem:[#allocation5 + $0x1240] sm:$0xff]
    %v671 = vld [vmem:[#allocation5 + $0x1248] sm:$0xff]
    %v672 = vld [vmem:[#allocation5 + $0x1250] sm:$0xff]
    %v673 = vld [vmem:[#allocation5 + $0x1258] sm:$0xff]
    %v674 = vld [vmem:[#allocation5 + $0x1260] sm:$0xff]
    %v675 = vld [vmem:[#allocation5 + $0x1268] sm:$0xff]
    %v676 = vld [vmem:[#allocation5 + $0x1270] sm:$0xff]
    %v677 = vld [vmem:[#allocation5 + $0x1278] sm:$0xff]
    %v678 = vld [vmem:[#allocation5 + $0x1280] sm:$0xff]
    %v679 = vld [vmem:[#allocation5 + $0x1288] sm:$0xff]
    %v680 = vld [vmem:[#allocation5 + $0x1290] sm:$0xff]
    %v681 = vld [vmem:[#allocation5 + $0x1298] sm:$0xff]
    %v682 = vld [vmem:[#allocation5 + $0x12a0] sm:$0xff]
    %v683 = vld [vmem:[#allocation5 + $0x12a8] sm:$0xff]
    %v684 = vld [vmem:[#allocation5 + $0x12b0] sm:$0xff]
    %v685 = vld [vmem:[#allocation5 + $0x12b8] sm:$0xff]
    %v686 = vld [vmem:[#allocation5 + $0x12c0] sm:$0xff]
    %v687 = vld [vmem:[#allocation5 + $0x12c8] sm:$0xff]
    %v688 = vld [vmem:[#allocation5 + $0x12d0] sm:$0xff]
    %v689 = vld [vmem:[#allocation5 + $0x12d8] sm:$0xff]
    %v690 = vld [vmem:[#allocation5 + $0x12e0] sm:$0xff]
    %v691 = vld [vmem:[#allocation5 + $0x12e8] sm:$0xff]
    %v692 = vld [vmem:[#allocation5 + $0x12f0] sm:$0xff]
    %v693 = vld [vmem:[#allocation5 + $0x12f8] sm:$0xff]
    %v694 = vld [vmem:[#allocation5 + $0x1300] sm:$0xff]
    %v695 = vld [vmem:[#allocation5 + $0x1308] sm:$0xff]
    %v696 = vld [vmem:[#allocation5 + $0x1310] sm:$0xff]
    %v697 = vld [vmem:[#allocation5 + $0x1318] sm:$0xff]
    %v698 = vld [vmem:[#allocation5 + $0x1320] sm:$0xff]
    %v699 = vld [vmem:[#allocation5 + $0x1328] sm:$0xff]
    %v700 = vld [vmem:[#allocation5 + $0x1330] sm:$0xff]
    %v701 = vld [vmem:[#allocation5 + $0x1338] sm:$0xff]
    %v702 = vld [vmem:[#allocation5 + $0x1340] sm:$0xff]
    %v703 = vld [vmem:[#allocation5 + $0x1348] sm:$0xff]
    %v704 = vld [vmem:[#allocation5 + $0x1350] sm:$0xff]
    %v705 = vld [vmem:[#allocation5 + $0x1358] sm:$0xff]
    %v706 = vld [vmem:[#allocation5 + $0x1360] sm:$0xff]
    %v707 = vld [vmem:[#allocation5 + $0x1368] sm:$0xff]
    %v708 = vld [vmem:[#allocation5 + $0x1370] sm:$0xff]
    %v709 = vld [vmem:[#allocation5 + $0x1378] sm:$0xff]
    %v710 = vld [vmem:[#allocation5 + $0x1380] sm:$0xff]
    %v711 = vld [vmem:[#allocation5 + $0x1388] sm:$0xff]
    %v712 = vld [vmem:[#allocation5 + $0x1390] sm:$0xff]
    %v713 = vld [vmem:[#allocation5 + $0x1398] sm:$0xff]
    %v714 = vld [vmem:[#allocation5 + $0x13a0] sm:$0xff]
    %v715 = vld [vmem:[#allocation5 + $0x13a8] sm:$0xff]
    %v716 = vld [vmem:[#allocation5 + $0x13b0] sm:$0xff]
    %v717 = vld [vmem:[#allocation5 + $0x13b8] sm:$0xff]
    %v718 = vld [vmem:[#allocation5 + $0x13c0] sm:$0xff]
    %v719 = vld [vmem:[#allocation5 + $0x13c8] sm:$0xff]
    %v720 = vld [vmem:[#allocation5 + $0x13d0] sm:$0xff]
    %v721 = vld [vmem:[#allocation5 + $0x13d8] sm:$0xff]
    %v722 = vld [vmem:[#allocation5 + $0x13e0] sm:$0xff]
    %v723 = vld [vmem:[#allocation5 + $0x13e8] sm:$0xff]
    %v724 = vld [vmem:[#allocation5 + $0x13f0] sm:$0xff]
    %v725 = vld [vmem:[#allocation5 + $0x13f8] sm:$0xff]
    %v726 = vld [vmem:[#allocation5 + $0x1400] sm:$0xff]
    %v727 = vld [vmem:[#allocation5 + $0x1408] sm:$0xff]
    %v728 = vld [vmem:[#allocation5 + $0x1410] sm:$0xff]
    %v729 = vld [vmem:[#allocation5 + $0x1418] sm:$0xff]
    %v730 = vld [vmem:[#allocation5 + $0x1420] sm:$0xff]
    %v731 = vld [vmem:[#allocation5 + $0x1428] sm:$0xff]
    %v732 = vld [vmem:[#allocation5 + $0x1430] sm:$0xff]
    %v733 = vld [vmem:[#allocation5 + $0x1438] sm:$0xff]
    %v734 = vld [vmem:[#allocation5 + $0x1440] sm:$0xff]
    %v735 = vld [vmem:[#allocation5 + $0x1448] sm:$0xff]
    %v736 = vld [vmem:[#allocation5 + $0x1450] sm:$0xff]
    %v737 = vld [vmem:[#allocation5 + $0x1458] sm:$0xff]
    %v738 = vld [vmem:[#allocation5 + $0x1460] sm:$0xff]
    %v739 = vld [vmem:[#allocation5 + $0x1468] sm:$0xff]
    %v740 = vld [vmem:[#allocation5 + $0x1470] sm:$0xff]
    %v741 = vld [vmem:[#allocation5 + $0x1478] sm:$0xff]
    %v742 = vld [vmem:[#allocation5 + $0x1480] sm:$0xff]
    %v743 = vld [vmem:[#allocation5 + $0x1488] sm:$0xff]
    %v744 = vld [vmem:[#allocation5 + $0x1490] sm:$0xff]
    %v745 = vld [vmem:[#allocation5 + $0x1498] sm:$0xff]
    %v746 = vld [vmem:[#allocation5 + $0x14a0] sm:$0xff]
    %v747 = vld [vmem:[#allocation5 + $0x14a8] sm:$0xff]
    %v748 = vld [vmem:[#allocation5 + $0x14b0] sm:$0xff]
    %v749 = vld [vmem:[#allocation5 + $0x14b8] sm:$0xff]
    %v750 = vld [vmem:[#allocation5 + $0x14c0] sm:$0xff]
    %v751 = vld [vmem:[#allocation5 + $0x14c8] sm:$0xff]
    %v752 = vld [vmem:[#allocation5 + $0x14d0] sm:$0xff]
    %v753 = vld [vmem:[#allocation5 + $0x14d8] sm:$0xff]
    %v754 = vld [vmem:[#allocation5 + $0x14e0] sm:$0xff]
    %v755 = vld [vmem:[#allocation5 + $0x14e8] sm:$0xff]
    %v756 = vld [vmem:[#allocation5 + $0x14f0] sm:$0xff]
    %v757 = vld [vmem:[#allocation5 + $0x14f8] sm:$0xff]
    %v758 = vld [vmem:[#allocation5 + $0x1500] sm:$0xff]
    %v759 = vld [vmem:[#allocation5 + $0x1508] sm:$0xff]
    %v760 = vld [vmem:[#allocation5 + $0x1510] sm:$0xff]
    %v761 = vld [vmem:[#allocation5 + $0x1518] sm:$0xff]
    %v762 = vld [vmem:[#allocation5 + $0x1520] sm:$0xff]
    %v763 = vld [vmem:[#allocation5 + $0x1528] sm:$0xff]
    %v764 = vld [vmem:[#allocation5 + $0x1530] sm:$0xff]
    %v765 = vld [vmem:[#allocation5 + $0x1538] sm:$0xff]
    %v766 = vld [vmem:[#allocation5 + $0x1540] sm:$0xff]
    %v767 = vld [vmem:[#allocation5 + $0x1548] sm:$0xff]
    %v768 = vld [vmem:[#allocation5 + $0x1550] sm:$0xff]
    %v769 = vld [vmem:[#allocation5 + $0x1558] sm:$0xff]
    %v770 = vld [vmem:[#allocation5 + $0x1560] sm:$0xff]
    %v771 = vld [vmem:[#allocation5 + $0x1568] sm:$0xff]
    %v772 = vld [vmem:[#allocation5 + $0x1570] sm:$0xff]
    %v773 = vld [vmem:[#allocation5 + $0x1578] sm:$0xff]
    %v774 = vld [vmem:[#allocation5 + $0x1580] sm:$0xff]
    %v775 = vld [vmem:[#allocation5 + $0x1588] sm:$0xff]
    %v776 = vld [vmem:[#allocation5 + $0x1590] sm:$0xff]
    %v777 = vld [vmem:[#allocation5 + $0x1598] sm:$0xff]
    %v778 = vld [vmem:[#allocation5 + $0x15a0] sm:$0xff]
    %v779 = vld [vmem:[#allocation5 + $0x15a8] sm:$0xff]
    %v780 = vld [vmem:[#allocation5 + $0x15b0] sm:$0xff]
    %v781 = vld [vmem:[#allocation5 + $0x15b8] sm:$0xff]
    %v782 = vld [vmem:[#allocation5 + $0x15c0] sm:$0xff]
    %v783 = vld [vmem:[#allocation5 + $0x15c8] sm:$0xff]
    %v784 = vld [vmem:[#allocation5 + $0x15d0] sm:$0xff]
    %v785 = vld [vmem:[#allocation5 + $0x15d8] sm:$0xff]
    %v786 = vld [vmem:[#allocation5 + $0x15e0] sm:$0xff]
    %v787 = vld [vmem:[#allocation5 + $0x15e8] sm:$0xff]
    %v788 = vld [vmem:[#allocation5 + $0x15f0] sm:$0xff]
    %v789 = vld [vmem:[#allocation5 + $0x15f8] sm:$0xff]
    %v790 = vld [vmem:[#allocation5 + $0x1600] sm:$0xff]
    %v791 = vld [vmem:[#allocation5 + $0x1608] sm:$0xff]
    %v792 = vld [vmem:[#allocation5 + $0x1610] sm:$0xff]
    %v793 = vld [vmem:[#allocation5 + $0x1618] sm:$0xff]
    %v794 = vld [vmem:[#allocation5 + $0x1620] sm:$0xff]
    %v795 = vld [vmem:[#allocation5 + $0x1628] sm:$0xff]
    %v796 = vld [vmem:[#allocation5 + $0x1630] sm:$0xff]
    %v797 = vld [vmem:[#allocation5 + $0x1638] sm:$0xff]
    %v798 = vld [vmem:[#allocation5 + $0x1640] sm:$0xff]
    %v799 = vld [vmem:[#allocation5 + $0x1648] sm:$0xff]
    %v800 = vld [vmem:[#allocation5 + $0x1650] sm:$0xff]
    %v801 = vld [vmem:[#allocation5 + $0x1658] sm:$0xff]
    %v802 = vld [vmem:[#allocation5 + $0x1660] sm:$0xff]
    %v803 = vld [vmem:[#allocation5 + $0x1668] sm:$0xff]
    %v804 = vld [vmem:[#allocation5 + $0x1670] sm:$0xff]
    %v805 = vld [vmem:[#allocation5 + $0x1678] sm:$0xff]
    %v806 = vld [vmem:[#allocation5 + $0x1680] sm:$0xff]
    %v807 = vld [vmem:[#allocation5 + $0x1688] sm:$0xff]
    %v808 = vld [vmem:[#allocation5 + $0x1690] sm:$0xff]
    %v809 = vld [vmem:[#allocation5 + $0x1698] sm:$0xff]
    %v810 = vld [vmem:[#allocation5 + $0x16a0] sm:$0xff]
    %v811 = vld [vmem:[#allocation5 + $0x16a8] sm:$0xff]
    %v812 = vld [vmem:[#allocation5 + $0x16b0] sm:$0xff]
    %v813 = vld [vmem:[#allocation5 + $0x16b8] sm:$0xff]
    %v814 = vld [vmem:[#allocation5 + $0x16c0] sm:$0xff]
    %v815 = vld [vmem:[#allocation5 + $0x16c8] sm:$0xff]
    %v816 = vld [vmem:[#allocation5 + $0x16d0] sm:$0xff]
    %v817 = vld [vmem:[#allocation5 + $0x16d8] sm:$0xff]
    %v818 = vld [vmem:[#allocation5 + $0x16e0] sm:$0xff]
    %v819 = vld [vmem:[#allocation5 + $0x16e8] sm:$0xff]
    %v820 = vld [vmem:[#allocation5 + $0x16f0] sm:$0xff]
    %v821 = vld [vmem:[#allocation5 + $0x16f8] sm:$0xff]
    %v822 = vld [vmem:[#allocation5 + $0x1700] sm:$0xff]
    %v823 = vld [vmem:[#allocation5 + $0x1708] sm:$0xff]
    %v824 = vld [vmem:[#allocation5 + $0x1710] sm:$0xff]
    %v825 = vld [vmem:[#allocation5 + $0x1718] sm:$0xff]
    %v826 = vld [vmem:[#allocation5 + $0x1720] sm:$0xff]
    %v827 = vld [vmem:[#allocation5 + $0x1728] sm:$0xff]
    %v828 = vld [vmem:[#allocation5 + $0x1730] sm:$0xff]
    %v829 = vld [vmem:[#allocation5 + $0x1738] sm:$0xff]
    %v830 = vld [vmem:[#allocation5 + $0x1740] sm:$0xff]
    %v831 = vld [vmem:[#allocation5 + $0x1748] sm:$0xff]
    %v832 = vld [vmem:[#allocation5 + $0x1750] sm:$0xff]
    %v833 = vld [vmem:[#allocation5 + $0x1758] sm:$0xff]
    %v834 = vld [vmem:[#allocation5 + $0x1760] sm:$0xff]
    %v835 = vld [vmem:[#allocation5 + $0x1768] sm:$0xff]
    %v836 = vld [vmem:[#allocation5 + $0x1770] sm:$0xff]
    %v837 = vld [vmem:[#allocation5 + $0x1778] sm:$0xff]
    %v838 = vld [vmem:[#allocation5 + $0x1780] sm:$0xff]
    %v839 = vld [vmem:[#allocation5 + $0x1788] sm:$0xff]
    %v840 = vld [vmem:[#allocation5 + $0x1790] sm:$0xff]
    %v841 = vld [vmem:[#allocation5 + $0x1798] sm:$0xff]
    %v842 = vld [vmem:[#allocation5 + $0x17a0] sm:$0xff]
    %v843 = vld [vmem:[#allocation5 + $0x17a8] sm:$0xff]
    %v844 = vld [vmem:[#allocation5 + $0x17b0] sm:$0xff]
    %v845 = vld [vmem:[#allocation5 + $0x17b8] sm:$0xff]
    %v846 = vld [vmem:[#allocation5 + $0x17c0] sm:$0xff]
    %v847 = vld [vmem:[#allocation5 + $0x17c8] sm:$0xff]
    %v848 = vld [vmem:[#allocation5 + $0x17d0] sm:$0xff]
    %v849 = vld [vmem:[#allocation5 + $0x17d8] sm:$0xff]
    %v850 = vld [vmem:[#allocation5 + $0x17e0] sm:$0xff]
    %v851 = vld [vmem:[#allocation5 + $0x17e8] sm:$0xff]
    %v852 = vld [vmem:[#allocation5 + $0x17f0] sm:$0xff]
    %v853 = vld [vmem:[#allocation5 + $0x17f8] sm:$0xff]
    %v854 = vld [vmem:[#allocation5 + $0x1800] sm:$0xff]
    %v855 = vld [vmem:[#allocation5 + $0x1808] sm:$0xff]
    %v856 = vld [vmem:[#allocation5 + $0x1810] sm:$0xff]
    %v857 = vld [vmem:[#allocation5 + $0x1818] sm:$0xff]
    %v858 = vld [vmem:[#allocation5 + $0x1820] sm:$0xff]
    %v859 = vld [vmem:[#allocation5 + $0x1828] sm:$0xff]
    %v860 = vld [vmem:[#allocation5 + $0x1830] sm:$0xff]
    %v861 = vld [vmem:[#allocation5 + $0x1838] sm:$0xff]
    %v862 = vld [vmem:[#allocation5 + $0x1840] sm:$0xff]
    %v863 = vld [vmem:[#allocation5 + $0x1848] sm:$0xff]
    %v864 = vld [vmem:[#allocation5 + $0x1850] sm:$0xff]
    %v865 = vld [vmem:[#allocation5 + $0x1858] sm:$0xff]
    %v866 = vld [vmem:[#allocation5 + $0x1860] sm:$0xff]
    %v867 = vld [vmem:[#allocation5 + $0x1868] sm:$0xff]
    %v868 = vld [vmem:[#allocation5 + $0x1870] sm:$0xff]
    %v869 = vld [vmem:[#allocation5 + $0x1878] sm:$0xff]
    %v870 = vld [vmem:[#allocation5 + $0x1880] sm:$0xff]
    %v871 = vld [vmem:[#allocation5 + $0x1888] sm:$0xff]
    %v872 = vld [vmem:[#allocation5 + $0x1890] sm:$0xff]
    %v873 = vld [vmem:[#allocation5 + $0x1898] sm:$0xff]
    %v874 = vld [vmem:[#allocation5 + $0x18a0] sm:$0xff]
    %v875 = vld [vmem:[#allocation5 + $0x18a8] sm:$0xff]
    %v876 = vld [vmem:[#allocation5 + $0x18b0] sm:$0xff]
    %v877 = vld [vmem:[#allocation5 + $0x18b8] sm:$0xff]
    %v878 = vld [vmem:[#allocation5 + $0x18c0] sm:$0xff]
    %v879 = vld [vmem:[#allocation5 + $0x18c8] sm:$0xff]
    %v880 = vld [vmem:[#allocation5 + $0x18d0] sm:$0xff]
    %v881 = vld [vmem:[#allocation5 + $0x18d8] sm:$0xff]
    %v882 = vld [vmem:[#allocation5 + $0x18e0] sm:$0xff]
    %v883 = vld [vmem:[#allocation5 + $0x18e8] sm:$0xff]
    %v884 = vld [vmem:[#allocation5 + $0x18f0] sm:$0xff]
    %v885 = vld [vmem:[#allocation5 + $0x18f8] sm:$0xff]
    %v886 = vld [vmem:[#allocation5 + $0x1900] sm:$0xff]
    %v887 = vld [vmem:[#allocation5 + $0x1908] sm:$0xff]
    %v888 = vld [vmem:[#allocation5 + $0x1910] sm:$0xff]
    %v889 = vld [vmem:[#allocation5 + $0x1918] sm:$0xff]
    %v890 = vld [vmem:[#allocation5 + $0x1920] sm:$0xff]
    %v891 = vld [vmem:[#allocation5 + $0x1928] sm:$0xff]
    %v892 = vld [vmem:[#allocation5 + $0x1930] sm:$0xff]
    %v893 = vld [vmem:[#allocation5 + $0x1938] sm:$0xff]
    %v894 = vld [vmem:[#allocation5 + $0x1940] sm:$0xff]
    %v895 = vld [vmem:[#allocation5 + $0x1948] sm:$0xff]
    %v896 = vld [vmem:[#allocation5 + $0x1950] sm:$0xff]
    %v897 = vld [vmem:[#allocation5 + $0x1958] sm:$0xff]
    %v898 = vld [vmem:[#allocation5 + $0x1960] sm:$0xff]
    %v899 = vld [vmem:[#allocation5 + $0x1968] sm:$0xff]
    %v900 = vld [vmem:[#allocation5 + $0x1970] sm:$0xff]
    %v901 = vld [vmem:[#allocation5 + $0x1978] sm:$0xff]
    %v902 = vld [vmem:[#allocation5 + $0x1980] sm:$0xff]
    %v903 = vld [vmem:[#allocation5 + $0x1988] sm:$0xff]
    %v904 = vld [vmem:[#allocation5 + $0x1990] sm:$0xff]
    %v905 = vld [vmem:[#allocation5 + $0x1998] sm:$0xff]
    %v906 = vld [vmem:[#allocation5 + $0x19a0] sm:$0xff]
    %v907 = vld [vmem:[#allocation5 + $0x19a8] sm:$0xff]
    %v908 = vld [vmem:[#allocation5 + $0x19b0] sm:$0xff]
    %v909 = vld [vmem:[#allocation5 + $0x19b8] sm:$0xff]
    %v910 = vld [vmem:[#allocation5 + $0x19c0] sm:$0xff]
    %v911 = vld [vmem:[#allocation5 + $0x19c8] sm:$0xff]
    %v912 = vld [vmem:[#allocation5 + $0x19d0] sm:$0xff]
    %v913 = vld [vmem:[#allocation5 + $0x19d8] sm:$0xff]
    %v914 = vld [vmem:[#allocation5 + $0x19e0] sm:$0xff]
    %v915 = vld [vmem:[#allocation5 + $0x19e8] sm:$0xff]
    %v916 = vld [vmem:[#allocation5 + $0x19f0] sm:$0xff]
    %v917 = vld [vmem:[#allocation5 + $0x19f8] sm:$0xff]
    %v918 = vld [vmem:[#allocation5 + $0x1a00] sm:$0xff]
    %v919 = vld [vmem:[#allocation5 + $0x1a08] sm:$0xff]
    %v920 = vld [vmem:[#allocation5 + $0x1a10] sm:$0xff]
    %v921 = vld [vmem:[#allocation5 + $0x1a18] sm:$0xff]
    %v922 = vld [vmem:[#allocation5 + $0x1a20] sm:$0xff]
    %v923 = vld [vmem:[#allocation5 + $0x1a28] sm:$0xff]
    %v924 = vld [vmem:[#allocation5 + $0x1a30] sm:$0xff]
    %v925 = vld [vmem:[#allocation5 + $0x1a38] sm:$0xff]
    %v926 = vld [vmem:[#allocation5 + $0x1a40] sm:$0xff]
    %v927 = vld [vmem:[#allocation5 + $0x1a48] sm:$0xff]
    %v928 = vld [vmem:[#allocation5 + $0x1a50] sm:$0xff]
    %v929 = vld [vmem:[#allocation5 + $0x1a58] sm:$0xff]
    %v930 = vld [vmem:[#allocation5 + $0x1a60] sm:$0xff]
    %v931 = vld [vmem:[#allocation5 + $0x1a68] sm:$0xff]
    %v932 = vld [vmem:[#allocation5 + $0x1a70] sm:$0xff]
    %v933 = vld [vmem:[#allocation5 + $0x1a78] sm:$0xff]
    %v934 = vld [vmem:[#allocation5 + $0x1a80] sm:$0xff]
    %v935 = vld [vmem:[#allocation5 + $0x1a88] sm:$0xff]
    %v936 = vld [vmem:[#allocation5 + $0x1a90] sm:$0xff]
    %v937 = vld [vmem:[#allocation5 + $0x1a98] sm:$0xff]
    %v938 = vld [vmem:[#allocation5 + $0x1aa0] sm:$0xff]
    %v939 = vld [vmem:[#allocation5 + $0x1aa8] sm:$0xff]
    %v940 = vld [vmem:[#allocation5 + $0x1ab0] sm:$0xff]
    %v941 = vld [vmem:[#allocation5 + $0x1ab8] sm:$0xff]
    %v942 = vld [vmem:[#allocation5 + $0x1ac0] sm:$0xff]
    %v943 = vld [vmem:[#allocation5 + $0x1ac8] sm:$0xff]
    %v944 = vld [vmem:[#allocation5 + $0x1ad0] sm:$0xff]
    %v945 = vld [vmem:[#allocation5 + $0x1ad8] sm:$0xff]
    %v946 = vld [vmem:[#allocation5 + $0x1ae0] sm:$0xff]
    %v947 = vld [vmem:[#allocation5 + $0x1ae8] sm:$0xff]
    %v948 = vld [vmem:[#allocation5 + $0x1af0] sm:$0xff]
    %v949 = vld [vmem:[#allocation5 + $0x1af8] sm:$0xff]
    %v950 = vld [vmem:[#allocation5 + $0x1b00] sm:$0xff]
    %v951 = vld [vmem:[#allocation5 + $0x1b08] sm:$0xff]
    %v952 = vld [vmem:[#allocation5 + $0x1b10] sm:$0xff]
    %v953 = vld [vmem:[#allocation5 + $0x1b18] sm:$0xff]
    %v954 = vld [vmem:[#allocation5 + $0x1b20] sm:$0xff]
    %v955 = vld [vmem:[#allocation5 + $0x1b28] sm:$0xff]
    %v956 = vld [vmem:[#allocation5 + $0x1b30] sm:$0xff]
    %v957 = vld [vmem:[#allocation5 + $0x1b38] sm:$0xff]
    %v958 = vld [vmem:[#allocation5 + $0x1b40] sm:$0xff]
    %v959 = vld [vmem:[#allocation5 + $0x1b48] sm:$0xff]
    %v960 = vld [vmem:[#allocation5 + $0x1b50] sm:$0xff]
    %v961 = vld [vmem:[#allocation5 + $0x1b58] sm:$0xff]
    %v962 = vld [vmem:[#allocation5 + $0x1b60] sm:$0xff]
    %v963 = vld [vmem:[#allocation5 + $0x1b68] sm:$0xff]
    %v964 = vld [vmem:[#allocation5 + $0x1b70] sm:$0xff]
    %v965 = vld [vmem:[#allocation5 + $0x1b78] sm:$0xff]
    %v966 = vld [vmem:[#allocation5 + $0x1b80] sm:$0xff]
    %v967 = vld [vmem:[#allocation5 + $0x1b88] sm:$0xff]
    %v968 = vld [vmem:[#allocation5 + $0x1b90] sm:$0xff]
    %v969 = vld [vmem:[#allocation5 + $0x1b98] sm:$0xff]
    %v970 = vld [vmem:[#allocation5 + $0x1ba0] sm:$0xff]
    %v971 = vld [vmem:[#allocation5 + $0x1ba8] sm:$0xff]
    %v972 = vld [vmem:[#allocation5 + $0x1bb0] sm:$0xff]
    %v973 = vld [vmem:[#allocation5 + $0x1bb8] sm:$0xff]
    %v974 = vld [vmem:[#allocation5 + $0x1bc0] sm:$0xff]
    %v975 = vld [vmem:[#allocation5 + $0x1bc8] sm:$0xff]
    %v976 = vld [vmem:[#allocation5 + $0x1bd0] sm:$0xff]
    %v977 = vld [vmem:[#allocation5 + $0x1bd8] sm:$0xff]
    %v978 = vld [vmem:[#allocation5 + $0x1be0] sm:$0xff]
    %v979 = vld [vmem:[#allocation5 + $0x1be8] sm:$0xff]
    %v980 = vld [vmem:[#allocation5 + $0x1bf0] sm:$0xff]
    %v981 = vld [vmem:[#allocation5 + $0x1bf8] sm:$0xff]
    %v982 = vld [vmem:[#allocation5 + $0x1c00] sm:$0xff]
    %v983 = vld [vmem:[#allocation5 + $0x1c08] sm:$0xff]
    %v984 = vld [vmem:[#allocation5 + $0x1c10] sm:$0xff]
    %v985 = vld [vmem:[#allocation5 + $0x1c18] sm:$0xff]
    %v986 = vld [vmem:[#allocation5 + $0x1c20] sm:$0xff]
    %v987 = vld [vmem:[#allocation5 + $0x1c28] sm:$0xff]
    %v988 = vld [vmem:[#allocation5 + $0x1c30] sm:$0xff]
    %v989 = vld [vmem:[#allocation5 + $0x1c38] sm:$0xff]
    %v990 = vld [vmem:[#allocation5 + $0x1c40] sm:$0xff]
    %v991 = vld [vmem:[#allocation5 + $0x1c48] sm:$0xff]
    %v992 = vld [vmem:[#allocation5 + $0x1c50] sm:$0xff]
    %v993 = vld [vmem:[#allocation5 + $0x1c58] sm:$0xff]
    %v994 = vld [vmem:[#allocation5 + $0x1c60] sm:$0xff]
    %v995 = vld [vmem:[#allocation5 + $0x1c68] sm:$0xff]
    %v996 = vld [vmem:[#allocation5 + $0x1c70] sm:$0xff]
    %v997 = vld [vmem:[#allocation5 + $0x1c78] sm:$0xff]
    %v998 = vld [vmem:[#allocation5 + $0x1c80] sm:$0xff]
    %v999 = vld [vmem:[#allocation5 + $0x1c88] sm:$0xff]
    %v1000 = vld [vmem:[#allocation5 + $0x1c90] sm:$0xff]
    %v1001 = vld [vmem:[#allocation5 + $0x1c98] sm:$0xff]
    %v1002 = vld [vmem:[#allocation5 + $0x1ca0] sm:$0xff]
    %v1003 = vld [vmem:[#allocation5 + $0x1ca8] sm:$0xff]
    %v1004 = vld [vmem:[#allocation5 + $0x1cb0] sm:$0xff]
    %v1005 = vld [vmem:[#allocation5 + $0x1cb8] sm:$0xff]
    %v1006 = vld [vmem:[#allocation5 + $0x1cc0] sm:$0xff]
    %v1007 = vld [vmem:[#allocation5 + $0x1cc8] sm:$0xff]
    %v1008 = vld [vmem:[#allocation5 + $0x1cd0] sm:$0xff]
    %v1009 = vld [vmem:[#allocation5 + $0x1cd8] sm:$0xff]
    %v1010 = vld [vmem:[#allocation5 + $0x1ce0] sm:$0xff]
    %v1011 = vld [vmem:[#allocation5 + $0x1ce8] sm:$0xff]
    %v1012 = vld [vmem:[#allocation5 + $0x1cf0] sm:$0xff]
    %v1013 = vld [vmem:[#allocation5 + $0x1cf8] sm:$0xff]
    %v1014 = vld [vmem:[#allocation5 + $0x1d00] sm:$0xff]
    %v1015 = vld [vmem:[#allocation5 + $0x1d08] sm:$0xff]
    %v1016 = vld [vmem:[#allocation5 + $0x1d10] sm:$0xff]
    %v1017 = vld [vmem:[#allocation5 + $0x1d18] sm:$0xff]
    %v1018 = vld [vmem:[#allocation5 + $0x1d20] sm:$0xff]
    %v1019 = vld [vmem:[#allocation5 + $0x1d28] sm:$0xff]
    %v1020 = vld [vmem:[#allocation5 + $0x1d30] sm:$0xff]
    %v1021 = vld [vmem:[#allocation5 + $0x1d38] sm:$0xff]
    %v1022 = vld [vmem:[#allocation5 + $0x1d40] sm:$0xff]
    %v1023 = vld [vmem:[#allocation5 + $0x1d48] sm:$0xff]
    %v1024 = vld [vmem:[#allocation5 + $0x1d50] sm:$0xff]
    %v1025 = vld [vmem:[#allocation5 + $0x1d58] sm:$0xff]
    %v1026 = vld [vmem:[#allocation5 + $0x1d60] sm:$0xff]
    %v1027 = vld [vmem:[#allocation5 + $0x1d68] sm:$0xff]
    %v1028 = vld [vmem:[#allocation5 + $0x1d70] sm:$0xff]
    %v1029 = vld [vmem:[#allocation5 + $0x1d78] sm:$0xff]
    %v1030 = vld [vmem:[#allocation5 + $0x1d80] sm:$0xff]
    %v1031 = vld [vmem:[#allocation5 + $0x1d88] sm:$0xff]
    %v1032 = vld [vmem:[#allocation5 + $0x1d90] sm:$0xff]
    %v1033 = vld [vmem:[#allocation5 + $0x1d98] sm:$0xff]
    %v1034 = vld [vmem:[#allocation5 + $0x1da0] sm:$0xff]
    %v1035 = vld [vmem:[#allocation5 + $0x1da8] sm:$0xff]
    %v1036 = vld [vmem:[#allocation5 + $0x1db0] sm:$0xff]
    %v1037 = vld [vmem:[#allocation5 + $0x1db8] sm:$0xff]
    %v1038 = vld [vmem:[#allocation5 + $0x1dc0] sm:$0xff]
    %v1039 = vld [vmem:[#allocation5 + $0x1dc8] sm:$0xff]
    %v1040 = vld [vmem:[#allocation5 + $0x1dd0] sm:$0xff]
    %v1041 = vld [vmem:[#allocation5 + $0x1dd8] sm:$0xff]
    %v1042 = vld [vmem:[#allocation5 + $0x1de0] sm:$0xff]
    %v1043 = vld [vmem:[#allocation5 + $0x1de8] sm:$0xff]
    %v1044 = vld [vmem:[#allocation5 + $0x1df0] sm:$0xff]
    %v1045 = vld [vmem:[#allocation5 + $0x1df8] sm:$0xff]
    %v1046 = vld [vmem:[#allocation5 + $0x1e00] sm:$0xff]
    %v1047 = vld [vmem:[#allocation5 + $0x1e08] sm:$0xff]
    %v1048 = vld [vmem:[#allocation5 + $0x1e10] sm:$0xff]
    %v1049 = vld [vmem:[#allocation5 + $0x1e18] sm:$0xff]
    %v1050 = vld [vmem:[#allocation5 + $0x1e20] sm:$0xff]
    %v1051 = vld [vmem:[#allocation5 + $0x1e28] sm:$0xff]
    %v1052 = vld [vmem:[#allocation5 + $0x1e30] sm:$0xff]
    %v1053 = vld [vmem:[#allocation5 + $0x1e38] sm:$0xff]
    %v1054 = vld [vmem:[#allocation5 + $0x1e40] sm:$0xff]
    %v1055 = vld [vmem:[#allocation5 + $0x1e48] sm:$0xff]
    %v1056 = vld [vmem:[#allocation5 + $0x1e50] sm:$0xff]
    %v1057 = vld [vmem:[#allocation5 + $0x1e58] sm:$0xff]
    %v1058 = vld [vmem:[#allocation5 + $0x1e60] sm:$0xff]
    %v1059 = vld [vmem:[#allocation5 + $0x1e68] sm:$0xff]
    %v1060 = vld [vmem:[#allocation5 + $0x1e70] sm:$0xff]
    %v1061 = vld [vmem:[#allocation5 + $0x1e78] sm:$0xff]
    %v1062 = vld [vmem:[#allocation5 + $0x1e80] sm:$0xff]
    %v1063 = vld [vmem:[#allocation5 + $0x1e88] sm:$0xff]
    %v1064 = vld [vmem:[#allocation5 + $0x1e90] sm:$0xff]
    %v1065 = vld [vmem:[#allocation5 + $0x1e98] sm:$0xff]
    %v1066 = vld [vmem:[#allocation5 + $0x1ea0] sm:$0xff]
    %v1067 = vld [vmem:[#allocation5 + $0x1ea8] sm:$0xff]
    %v1068 = vld [vmem:[#allocation5 + $0x1eb0] sm:$0xff]
    %v1069 = vld [vmem:[#allocation5 + $0x1eb8] sm:$0xff]
    %v1070 = vld [vmem:[#allocation5 + $0x1ec0] sm:$0xff]
    %v1071 = vld [vmem:[#allocation5 + $0x1ec8] sm:$0xff]
    %v1072 = vld [vmem:[#allocation5 + $0x1ed0] sm:$0xff]
    %v1073 = vld [vmem:[#allocation5 + $0x1ed8] sm:$0xff]
    %v1074 = vld [vmem:[#allocation5 + $0x1ee0] sm:$0xff]
    %v1075 = vld [vmem:[#allocation5 + $0x1ee8] sm:$0xff]
    %v1076 = vld [vmem:[#allocation5 + $0x1ef0] sm:$0xff]
    %v1077 = vld [vmem:[#allocation5 + $0x1ef8] sm:$0xff]
    %v1078 = vld [vmem:[#allocation5 + $0x1f00] sm:$0xff]
    %v1079 = vld [vmem:[#allocation5 + $0x1f08] sm:$0xff]
    %v1080 = vld [vmem:[#allocation5 + $0x1f10] sm:$0xff]
    %v1081 = vld [vmem:[#allocation5 + $0x1f18] sm:$0xff]
    %v1082 = vld [vmem:[#allocation5 + $0x1f20] sm:$0xff]
    %v1083 = vld [vmem:[#allocation5 + $0x1f28] sm:$0xff]
    %v1084 = vld [vmem:[#allocation5 + $0x1f30] sm:$0xff]
    %v1085 = vld [vmem:[#allocation5 + $0x1f38] sm:$0xff]
    %v1086 = vld [vmem:[#allocation5 + $0x1f40] sm:$0xff]
    %v1087 = vld [vmem:[#allocation5 + $0x1f48] sm:$0xff]
    %v1088 = vld [vmem:[#allocation5 + $0x1f50] sm:$0xff]
    %v1089 = vld [vmem:[#allocation5 + $0x1f58] sm:$0xff]
    %v1090 = vld [vmem:[#allocation5 + $0x1f60] sm:$0xff]
    %v1091 = vld [vmem:[#allocation5 + $0x1f68] sm:$0xff]
    %v1092 = vld [vmem:[#allocation5 + $0x1f70] sm:$0xff]
    %v1093 = vld [vmem:[#allocation5 + $0x1f78] sm:$0xff]
    %v1094 = vld [vmem:[#allocation5 + $0x1f80] sm:$0xff]
    %v1095 = vld [vmem:[#allocation5 + $0x1f88] sm:$0xff]
    %v1096 = vld [vmem:[#allocation5 + $0x1f90] sm:$0xff]
    %v1097 = vld [vmem:[#allocation5 + $0x1f98] sm:$0xff]
    %v1098 = vld [vmem:[#allocation5 + $0x1fa0] sm:$0xff]
    %v1099 = vld [vmem:[#allocation5 + $0x1fa8] sm:$0xff]
    %v1100 = vld [vmem:[#allocation5 + $0x1fb0] sm:$0xff]
    %v1101 = vld [vmem:[#allocation5 + $0x1fb8] sm:$0xff]
    %v1102 = vld [vmem:[#allocation5 + $0x1fc0] sm:$0xff]
    %v1103 = vld [vmem:[#allocation5 + $0x1fc8] sm:$0xff]
    %v1104 = vld [vmem:[#allocation5 + $0x1fd0] sm:$0xff]
    %v1105 = vld [vmem:[#allocation5 + $0x1fd8] sm:$0xff]
    %v1106 = vld [vmem:[#allocation5 + $0x1fe0] sm:$0xff]
    %v1107 = vld [vmem:[#allocation5 + $0x1fe8] sm:$0xff]
    %v1108 = vld [vmem:[#allocation5 + $0x1ff0] sm:$0xff]
    %v1109 = vld [vmem:[#allocation5 + $0x1ff8] sm:$0xff]
    %1110 = vmatprep.subr.mxu0 %v87
    %1111 = vmatpush1.msra.mxu0 %v86
    %1112 = vmatprep.subr.mxu0 %v91
    %1113 = vmatpush1.msra.mxu0 %v90
    %1114 = vmatprep.subr.mxu0 %v95
    %1115 = vmatpush1.msra.mxu0 %v94
    %1116 = vmatprep.subr.mxu0 %v99
    %1117 = vmatpush1.msra.mxu0 %v98
    %1118 = vmatprep.subr.mxu0 %v103
    %1119 = vmatpush1.msra.mxu0 %v102
    %1120 = vmatprep.subr.mxu0 %v107
    %1121 = vmatpush1.msra.mxu0 %v106
    %1122 = vmatprep.subr.mxu0 %v111
    %1123 = vmatpush1.msra.mxu0 %v110
    %1124 = vmatprep.subr.mxu0 %v115
    %1125 = vmatpush1.msra.mxu0 %v114
    %1126 = vmatprep.subr.mxu0 %v119
    %1127 = vmatpush1.msra.mxu0 %v118
    %1128 = vmatprep.subr.mxu0 %v123
    %1129 = vmatpush1.msra.mxu0 %v122
    %1130 = vmatprep.subr.mxu0 %v127
    %1131 = vmatpush1.msra.mxu0 %v126
    %1132 = vmatprep.subr.mxu0 %v131
    %1133 = vmatpush1.msra.mxu0 %v130
    %1134 = vmatprep.subr.mxu0 %v135
    %1135 = vmatpush1.msra.mxu0 %v134
    %1136 = vmatprep.subr.mxu0 %v139
    %1137 = vmatpush1.msra.mxu0 %v138
    %1138 = vmatprep.subr.mxu0 %v143
    %1139 = vmatpush1.msra.mxu0 %v142
    %1140 = vmatprep.subr.mxu0 %v147
    %1141 = vmatpush1.msra.mxu0 %v146
    %1142 = vmatprep.subr.mxu0 %v151
    %1143 = vmatpush1.msra.mxu0 %v150
    %1144 = vmatprep.subr.mxu0 %v155
    %1145 = vmatpush1.msra.mxu0 %v154
    %1146 = vmatprep.subr.mxu0 %v159
    %1147 = vmatpush1.msra.mxu0 %v158
    %1148 = vmatprep.subr.mxu0 %v163
    %1149 = vmatpush1.msra.mxu0 %v162
    %1150 = vmatprep.subr.mxu0 %v167
    %1151 = vmatpush1.msra.mxu0 %v166
    %1152 = vmatprep.subr.mxu0 %v171
    %1153 = vmatpush1.msra.mxu0 %v170
    %1154 = vmatprep.subr.mxu0 %v175
    %1155 = vmatpush1.msra.mxu0 %v174
    %1156 = vmatprep.subr.mxu0 %v179
    %1157 = vmatpush1.msra.mxu0 %v178
    %1158 = vmatprep.subr.mxu0 %v183
    %1159 = vmatpush1.msra.mxu0 %v182
    %1160 = vmatprep.subr.mxu0 %v187
    %1161 = vmatpush1.msra.mxu0 %v186
    %1162 = vmatprep.subr.mxu0 %v191
    %1163 = vmatpush1.msra.mxu0 %v190
    %1164 = vmatprep.subr.mxu0 %v195
    %1165 = vmatpush1.msra.mxu0 %v194
    %1166 = vmatprep.subr.mxu0 %v199
    %1167 = vmatpush1.msra.mxu0 %v198
    %1168 = vmatprep.subr.mxu0 %v203
    %1169 = vmatpush1.msra.mxu0 %v202
    %1170 = vmatprep.subr.mxu0 %v207
    %1171 = vmatpush1.msra.mxu0 %v206
    %1172 = vmatprep.subr.mxu0 %v211
    %1173 = vmatpush1.msra.mxu0 %v210
    %1174 = vmatprep.mubr.f32.mxu0 %v71
    %1175 = vmatmul.mubr.f32.gmra.mrb[0].mxu0 %v70
    %v1176 = vpop.f32.mrb[0].mxu0
    %v1177 = vadd.f32 0.0, %v1176
    %v1178 = vpop.f32.mrb[0].mxu0
    %v1179 = vadd.f32 0.0, %v1178
    %1180 = vdwg.mxu0
    %1181 = vmatprep.subr.mxu0 %v215
    %1182 = vmatpush1.msra.mxu0 %v214
    %1183 = vmatprep.subr.mxu0 %v219
    %1184 = vmatpush1.msra.mxu0 %v218
    %1185 = vmatprep.subr.mxu0 %v223
    %1186 = vmatpush1.msra.mxu0 %v222
    %1187 = vmatprep.subr.mxu0 %v227
    %1188 = vmatpush1.msra.mxu0 %v226
    %1189 = vmatprep.subr.mxu0 %v231
    %1190 = vmatpush1.msra.mxu0 %v230
    %1191 = vmatprep.subr.mxu0 %v235
    %1192 = vmatpush1.msra.mxu0 %v234
    %1193 = vmatprep.subr.mxu0 %v239
    %1194 = vmatpush1.msra.mxu0 %v238
    %1195 = vmatprep.subr.mxu0 %v243
    %1196 = vmatpush1.msra.mxu0 %v242
    %1197 = vmatprep.subr.mxu0 %v247
    %1198 = vmatpush1.msra.mxu0 %v246
    %1199 = vmatprep.subr.mxu0 %v251
    %1200 = vmatpush1.msra.mxu0 %v250
    %1201 = vmatprep.subr.mxu0 %v255
    %1202 = vmatpush1.msra.mxu0 %v254
    %1203 = vmatprep.subr.mxu0 %v259
    %1204 = vmatpush1.msra.mxu0 %v258
    %1205 = vmatprep.subr.mxu0 %v263
    %1206 = vmatpush1.msra.mxu0 %v262
    %1207 = vmatprep.subr.mxu0 %v267
    %1208 = vmatpush1.msra.mxu0 %v266
    %1209 = vmatprep.subr.mxu0 %v271
    %1210 = vmatpush1.msra.mxu0 %v270
    %1211 = vmatprep.subr.mxu0 %v275
    %1212 = vmatpush1.msra.mxu0 %v274
    %1213 = vmatprep.subr.mxu0 %v279
    %1214 = vmatpush1.msra.mxu0 %v278
    %1215 = vmatprep.subr.mxu0 %v283
    %1216 = vmatpush1.msra.mxu0 %v282
    %1217 = vmatprep.subr.mxu0 %v287
    %1218 = vmatpush1.msra.mxu0 %v286
    %1219 = vmatprep.subr.mxu0 %v291
    %1220 = vmatpush1.msra.mxu0 %v290
    %1221 = vmatprep.subr.mxu0 %v295
    %1222 = vmatpush1.msra.mxu0 %v294
    %1223 = vmatprep.subr.mxu0 %v299
    %1224 = vmatpush1.msra.mxu0 %v298
    %1225 = vmatprep.subr.mxu0 %v303
    %1226 = vmatpush1.msra.mxu0 %v302
    %1227 = vmatprep.subr.mxu0 %v307
    %1228 = vmatpush1.msra.mxu0 %v306
    %1229 = vmatprep.subr.mxu0 %v311
    %1230 = vmatpush1.msra.mxu0 %v310
    %1231 = vmatprep.subr.mxu0 %v315
    %1232 = vmatpush1.msra.mxu0 %v314
    %1233 = vmatprep.subr.mxu0 %v319
    %1234 = vmatpush1.msra.mxu0 %v318
    %1235 = vmatprep.subr.mxu0 %v323
    %1236 = vmatpush1.msra.mxu0 %v322
    %1237 = vmatprep.subr.mxu0 %v327
    %1238 = vmatpush1.msra.mxu0 %v326
    %1239 = vmatprep.subr.mxu0 %v331
    %1240 = vmatpush1.msra.mxu0 %v330
    %1241 = vmatprep.subr.mxu0 %v335
    %1242 = vmatpush1.msra.mxu0 %v334
    %1243 = vmatprep.subr.mxu0 %v339
    %1244 = vmatpush1.msra.mxu0 %v338
    %1245 = vmatprep.mubr.f32.mxu0 %v73
    %1246 = vmatmul.mubr.f32.gmra.mrb[0].mxu0 %v72
    %v1247 = vpop.f32.mrb[0].mxu0
    %v1248 = vadd.f32 %v1177, %v1247
    %v1249 = vpop.f32.mrb[0].mxu0
    %v1250 = vadd.f32 %v1179, %v1249
    %1251 = vdwg.mxu0
    %1252 = vmatprep.subr.mxu0 %v343
    %1253 = vmatpush1.msra.mxu0 %v342
    %1254 = vmatprep.subr.mxu0 %v347
    %1255 = vmatpush1.msra.mxu0 %v346
    %1256 = vmatprep.subr.mxu0 %v351
    %1257 = vmatpush1.msra.mxu0 %v350
    %1258 = vmatprep.subr.mxu0 %v355
    %1259 = vmatpush1.msra.mxu0 %v354
    %1260 = vmatprep.subr.mxu0 %v359
    %1261 = vmatpush1.msra.mxu0 %v358
    %1262 = vmatprep.subr.mxu0 %v363
    %1263 = vmatpush1.msra.mxu0 %v362
    %1264 = vmatprep.subr.mxu0 %v367
    %1265 = vmatpush1.msra.mxu0 %v366
    %1266 = vmatprep.subr.mxu0 %v371
    %1267 = vmatpush1.msra.mxu0 %v370
    %1268 = vmatprep.subr.mxu0 %v375
    %1269 = vmatpush1.msra.mxu0 %v374
    %1270 = vmatprep.subr.mxu0 %v379
    %1271 = vmatpush1.msra.mxu0 %v378
    %1272 = vmatprep.subr.mxu0 %v383
    %1273 = vmatpush1.msra.mxu0 %v382
    %1274 = vmatprep.subr.mxu0 %v387
    %1275 = vmatpush1.msra.mxu0 %v386
    %1276 = vmatprep.subr.mxu0 %v391
    %1277 = vmatpush1.msra.mxu0 %v390
    %1278 = vmatprep.subr.mxu0 %v395
    %1279 = vmatpush1.msra.mxu0 %v394
    %1280 = vmatprep.subr.mxu0 %v399
    %1281 = vmatpush1.msra.mxu0 %v398
    %1282 = vmatprep.subr.mxu0 %v403
    %1283 = vmatpush1.msra.mxu0 %v402
    %1284 = vmatprep.subr.mxu0 %v407
    %1285 = vmatpush1.msra.mxu0 %v406
    %1286 = vmatprep.subr.mxu0 %v411
    %1287 = vmatpush1.msra.mxu0 %v410
    %1288 = vmatprep.subr.mxu0 %v415
    %1289 = vmatpush1.msra.mxu0 %v414
    %1290 = vmatprep.subr.mxu0 %v419
    %1291 = vmatpush1.msra.mxu0 %v418
    %1292 = vmatprep.subr.mxu0 %v423
    %1293 = vmatpush1.msra.mxu0 %v422
    %1294 = vmatprep.subr.mxu0 %v427
    %1295 = vmatpush1.msra.mxu0 %v426
    %1296 = vmatprep.subr.mxu0 %v431
    %1297 = vmatpush1.msra.mxu0 %v430
    %1298 = vmatprep.subr.mxu0 %v435
    %1299 = vmatpush1.msra.mxu0 %v434
    %1300 = vmatprep.subr.mxu0 %v439
    %1301 = vmatpush1.msra.mxu0 %v438
    %1302 = vmatprep.subr.mxu0 %v443
    %1303 = vmatpush1.msra.mxu0 %v442
    %1304 = vmatprep.subr.mxu0 %v447
    %1305 = vmatpush1.msra.mxu0 %v446
    %1306 = vmatprep.subr.mxu0 %v451
    %1307 = vmatpush1.msra.mxu0 %v450
    %1308 = vmatprep.subr.mxu0 %v455
    %1309 = vmatpush1.msra.mxu0 %v454
    %1310 = vmatprep.subr.mxu0 %v459
    %1311 = vmatpush1.msra.mxu0 %v458
    %1312 = vmatprep.subr.mxu0 %v463
    %1313 = vmatpush1.msra.mxu0 %v462
    %1314 = vmatprep.subr.mxu0 %v467
    %1315 = vmatpush1.msra.mxu0 %v466
    %1316 = vmatprep.mubr.f32.mxu0 %v75
    %1317 = vmatmul.mubr.f32.gmra.mrb[0].mxu0 %v74
    %v1318 = vpop.f32.mrb[0].mxu0
    %v1319 = vadd.f32 %v1248, %v1318
    %v1320 = vpop.f32.mrb[0].mxu0
    %v1321 = vadd.f32 %v1250, %v1320
    %1322 = vdwg.mxu0
    %1323 = vmatprep.subr.mxu0 %v471
    %1324 = vmatpush1.msra.mxu0 %v470
    %1325 = vmatprep.subr.mxu0 %v475
    %1326 = vmatpush1.msra.mxu0 %v474
    %1327 = vmatprep.subr.mxu0 %v479
    %1328 = vmatpush1.msra.mxu0 %v478
    %1329 = vmatprep.subr.mxu0 %v483
    %1330 = vmatpush1.msra.mxu0 %v482
    %1331 = vmatprep.subr.mxu0 %v487
    %1332 = vmatpush1.msra.mxu0 %v486
    %1333 = vmatprep.subr.mxu0 %v491
    %1334 = vmatpush1.msra.mxu0 %v490
    %1335 = vmatprep.subr.mxu0 %v495
    %1336 = vmatpush1.msra.mxu0 %v494
    %1337 = vmatprep.subr.mxu0 %v499
    %1338 = vmatpush1.msra.mxu0 %v498
    %1339 = vmatprep.subr.mxu0 %v503
    %1340 = vmatpush1.msra.mxu0 %v502
    %1341 = vmatprep.subr.mxu0 %v507
    %1342 = vmatpush1.msra.mxu0 %v506
    %1343 = vmatprep.subr.mxu0 %v511
    %1344 = vmatpush1.msra.mxu0 %v510
    %1345 = vmatprep.subr.mxu0 %v515
    %1346 = vmatpush1.msra.mxu0 %v514
    %1347 = vmatprep.subr.mxu0 %v519
    %1348 = vmatpush1.msra.mxu0 %v518
    %1349 = vmatprep.subr.mxu0 %v523
    %1350 = vmatpush1.msra.mxu0 %v522
    %1351 = vmatprep.subr.mxu0 %v527
    %1352 = vmatpush1.msra.mxu0 %v526
    %1353 = vmatprep.subr.mxu0 %v531
    %1354 = vmatpush1.msra.mxu0 %v530
    %1355 = vmatprep.subr.mxu0 %v535
    %1356 = vmatpush1.msra.mxu0 %v534
    %1357 = vmatprep.subr.mxu0 %v539
    %1358 = vmatpush1.msra.mxu0 %v538
    %1359 = vmatprep.subr.mxu0 %v543
    %1360 = vmatpush1.msra.mxu0 %v542
    %1361 = vmatprep.subr.mxu0 %v547
    %1362 = vmatpush1.msra.mxu0 %v546
    %1363 = vmatprep.subr.mxu0 %v551
    %1364 = vmatpush1.msra.mxu0 %v550
    %1365 = vmatprep.subr.mxu0 %v555
    %1366 = vmatpush1.msra.mxu0 %v554
    %1367 = vmatprep.subr.mxu0 %v559
    %1368 = vmatpush1.msra.mxu0 %v558
    %1369 = vmatprep.subr.mxu0 %v563
    %1370 = vmatpush1.msra.mxu0 %v562
    %1371 = vmatprep.subr.mxu0 %v567
    %1372 = vmatpush1.msra.mxu0 %v566
    %1373 = vmatprep.subr.mxu0 %v571
    %1374 = vmatpush1.msra.mxu0 %v570
    %1375 = vmatprep.subr.mxu0 %v575
    %1376 = vmatpush1.msra.mxu0 %v574
    %1377 = vmatprep.subr.mxu0 %v579
    %1378 = vmatpush1.msra.mxu0 %v578
    %1379 = vmatprep.subr.mxu0 %v583
    %1380 = vmatpush1.msra.mxu0 %v582
    %1381 = vmatprep.subr.mxu0 %v587
    %1382 = vmatpush1.msra.mxu0 %v586
    %1383 = vmatprep.subr.mxu0 %v591
    %1384 = vmatpush1.msra.mxu0 %v590
    %1385 = vmatprep.subr.mxu0 %v595
    %1386 = vmatpush1.msra.mxu0 %v594
    %1387 = vmatprep.mubr.f32.mxu0 %v77
    %1388 = vmatmul.mubr.f32.gmra.mrb[0].mxu0 %v76
    %v1389 = vpop.f32.mrb[0].mxu0
    %v1390 = vadd.f32 %v1319, %v1389
    %v1391 = vpop.f32.mrb[0].mxu0
    %v1392 = vadd.f32 %v1321, %v1391
    %1393 = vdwg.mxu0
    %1394 = vmatprep.subr.mxu0 %v599
    %1395 = vmatpush1.msra.mxu0 %v598
    %1396 = vmatprep.subr.mxu0 %v603
    %1397 = vmatpush1.msra.mxu0 %v602
    %1398 = vmatprep.subr.mxu0 %v607
    %1399 = vmatpush1.msra.mxu0 %v606
    %1400 = vmatprep.subr.mxu0 %v611
    %1401 = vmatpush1.msra.mxu0 %v610
    %1402 = vmatprep.subr.mxu0 %v615
    %1403 = vmatpush1.msra.mxu0 %v614
    %1404 = vmatprep.subr.mxu0 %v619
    %1405 = vmatpush1.msra.mxu0 %v618
    %1406 = vmatprep.subr.mxu0 %v623
    %1407 = vmatpush1.msra.mxu0 %v622
    %1408 = vmatprep.subr.mxu0 %v627
    %1409 = vmatpush1.msra.mxu0 %v626
    %1410 = vmatprep.subr.mxu0 %v631
    %1411 = vmatpush1.msra.mxu0 %v630
    %1412 = vmatprep.subr.mxu0 %v635
    %1413 = vmatpush1.msra.mxu0 %v634
    %1414 = vmatprep.subr.mxu0 %v639
    %1415 = vmatpush1.msra.mxu0 %v638
    %1416 = vmatprep.subr.mxu0 %v643
    %1417 = vmatpush1.msra.mxu0 %v642
    %1418 = vmatprep.subr.mxu0 %v647
    %1419 = vmatpush1.msra.mxu0 %v646
    %1420 = vmatprep.subr.mxu0 %v651
    %1421 = vmatpush1.msra.mxu0 %v650
    %1422 = vmatprep.subr.mxu0 %v655
    %1423 = vmatpush1.msra.mxu0 %v654
    %1424 = vmatprep.subr.mxu0 %v659
    %1425 = vmatpush1.msra.mxu0 %v658
    %1426 = vmatprep.subr.mxu0 %v663
    %1427 = vmatpush1.msra.mxu0 %v662
    %1428 = vmatprep.subr.mxu0 %v667
    %1429 = vmatpush1.msra.mxu0 %v666
    %1430 = vmatprep.subr.mxu0 %v671
    %1431 = vmatpush1.msra.mxu0 %v670
    %1432 = vmatprep.subr.mxu0 %v675
    %1433 = vmatpush1.msra.mxu0 %v674
    %1434 = vmatprep.subr.mxu0 %v679
    %1435 = vmatpush1.msra.mxu0 %v678
    %1436 = vmatprep.subr.mxu0 %v683
    %1437 = vmatpush1.msra.mxu0 %v682
    %1438 = vmatprep.subr.mxu0 %v687
    %1439 = vmatpush1.msra.mxu0 %v686
    %1440 = vmatprep.subr.mxu0 %v691
    %1441 = vmatpush1.msra.mxu0 %v690
    %1442 = vmatprep.subr.mxu0 %v695
    %1443 = vmatpush1.msra.mxu0 %v694
    %1444 = vmatprep.subr.mxu0 %v699
    %1445 = vmatpush1.msra.mxu0 %v698
    %1446 = vmatprep.subr.mxu0 %v703
    %1447 = vmatpush1.msra.mxu0 %v702
    %1448 = vmatprep.subr.mxu0 %v707
    %1449 = vmatpush1.msra.mxu0 %v706
    %1450 = vmatprep.subr.mxu0 %v711
    %1451 = vmatpush1.msra.mxu0 %v710
    %1452 = vmatprep.subr.mxu0 %v715
    %1453 = vmatpush1.msra.mxu0 %v714
    %1454 = vmatprep.subr.mxu0 %v719
    %1455 = vmatpush1.msra.mxu0 %v718
    %1456 = vmatprep.subr.mxu0 %v723
    %1457 = vmatpush1.msra.mxu0 %v722
    %1458 = vmatprep.mubr.f32.mxu0 %v79
    %1459 = vmatmul.mubr.f32.gmra.mrb[0].mxu0 %v78
    %v1460 = vpop.f32.mrb[0].mxu0
    %v1461 = vadd.f32 %v1390, %v1460
    %v1462 = vpop.f32.mrb[0].mxu0
    %v1463 = vadd.f32 %v1392, %v1462
    %1464 = vdwg.mxu0
    %1465 = vmatprep.subr.mxu0 %v727
    %1466 = vmatpush1.msra.mxu0 %v726
    %1467 = vmatprep.subr.mxu0 %v731
    %1468 = vmatpush1.msra.mxu0 %v730
    %1469 = vmatprep.subr.mxu0 %v735
    %1470 = vmatpush1.msra.mxu0 %v734
    %1471 = vmatprep.subr.mxu0 %v739
    %1472 = vmatpush1.msra.mxu0 %v738
    %1473 = vmatprep.subr.mxu0 %v743
    %1474 = vmatpush1.msra.mxu0 %v742
    %1475 = vmatprep.subr.mxu0 %v747
    %1476 = vmatpush1.msra.mxu0 %v746
    %1477 = vmatprep.subr.mxu0 %v751
    %1478 = vmatpush1.msra.mxu0 %v750
    %1479 = vmatprep.subr.mxu0 %v755
    %1480 = vmatpush1.msra.mxu0 %v754
    %1481 = vmatprep.subr.mxu0 %v759
    %1482 = vmatpush1.msra.mxu0 %v758
    %1483 = vmatprep.subr.mxu0 %v763
    %1484 = vmatpush1.msra.mxu0 %v762
    %1485 = vmatprep.subr.mxu0 %v767
    %1486 = vmatpush1.msra.mxu0 %v766
    %1487 = vmatprep.subr.mxu0 %v771
    %1488 = vmatpush1.msra.mxu0 %v770
    %1489 = vmatprep.subr.mxu0 %v775
    %1490 = vmatpush1.msra.mxu0 %v774
    %1491 = vmatprep.subr.mxu0 %v779
    %1492 = vmatpush1.msra.mxu0 %v778
    %1493 = vmatprep.subr.mxu0 %v783
    %1494 = vmatpush1.msra.mxu0 %v782
    %1495 = vmatprep.subr.mxu0 %v787
    %1496 = vmatpush1.msra.mxu0 %v786
    %1497 = vmatprep.subr.mxu0 %v791
    %1498 = vmatpush1.msra.mxu0 %v790
    %1499 = vmatprep.subr.mxu0 %v795
    %1500 = vmatpush1.msra.mxu0 %v794
    %1501 = vmatprep.subr.mxu0 %v799
    %1502 = vmatpush1.msra.mxu0 %v798
    %1503 = vmatprep.subr.mxu0 %v803
    %1504 = vmatpush1.msra.mxu0 %v802
    %1505 = vmatprep.subr.mxu0 %v807
    %1506 = vmatpush1.msra.mxu0 %v806
    %1507 = vmatprep.subr.mxu0 %v811
    %1508 = vmatpush1.msra.mxu0 %v810
    %1509 = vmatprep.subr.mxu0 %v815
    %1510 = vmatpush1.msra.mxu0 %v814
    %1511 = vmatprep.subr.mxu0 %v819
    %1512 = vmatpush1.msra.mxu0 %v818
    %1513 = vmatprep.subr.mxu0 %v823
    %1514 = vmatpush1.msra.mxu0 %v822
    %1515 = vmatprep.subr.mxu0 %v827
    %1516 = vmatpush1.msra.mxu0 %v826
    %1517 = vmatprep.subr.mxu0 %v831
    %1518 = vmatpush1.msra.mxu0 %v830
    %1519 = vmatprep.subr.mxu0 %v835
    %1520 = vmatpush1.msra.mxu0 %v834
    %1521 = vmatprep.subr.mxu0 %v839
    %1522 = vmatpush1.msra.mxu0 %v838
    %1523 = vmatprep.subr.mxu0 %v843
    %1524 = vmatpush1.msra.mxu0 %v842
    %1525 = vmatprep.subr.mxu0 %v847
    %1526 = vmatpush1.msra.mxu0 %v846
    %1527 = vmatprep.subr.mxu0 %v851
    %1528 = vmatpush1.msra.mxu0 %v850
    %1529 = vmatprep.mubr.f32.mxu0 %v81
    %1530 = vmatmul.mubr.f32.gmra.mrb[0].mxu0 %v80
    %v1531 = vpop.f32.mrb[0].mxu0
    %v1532 = vadd.f32 %v1461, %v1531
    %v1533 = vpop.f32.mrb[0].mxu0
    %v1534 = vadd.f32 %v1463, %v1533
    %1535 = vdwg.mxu0
    %1536 = vmatprep.subr.mxu0 %v855
    %1537 = vmatpush1.msra.mxu0 %v854
    %1538 = vmatprep.subr.mxu0 %v859
    %1539 = vmatpush1.msra.mxu0 %v858
    %1540 = vmatprep.subr.mxu0 %v863
    %1541 = vmatpush1.msra.mxu0 %v862
    %1542 = vmatprep.subr.mxu0 %v867
    %1543 = vmatpush1.msra.mxu0 %v866
    %1544 = vmatprep.subr.mxu0 %v871
    %1545 = vmatpush1.msra.mxu0 %v870
    %1546 = vmatprep.subr.mxu0 %v875
    %1547 = vmatpush1.msra.mxu0 %v874
    %1548 = vmatprep.subr.mxu0 %v879
    %1549 = vmatpush1.msra.mxu0 %v878
    %1550 = vmatprep.subr.mxu0 %v883
    %1551 = vmatpush1.msra.mxu0 %v882
    %1552 = vmatprep.subr.mxu0 %v887
    %1553 = vmatpush1.msra.mxu0 %v886
    %1554 = vmatprep.subr.mxu0 %v891
    %1555 = vmatpush1.msra.mxu0 %v890
    %1556 = vmatprep.subr.mxu0 %v895
    %1557 = vmatpush1.msra.mxu0 %v894
    %1558 = vmatprep.subr.mxu0 %v899
    %1559 = vmatpush1.msra.mxu0 %v898
    %1560 = vmatprep.subr.mxu0 %v903
    %1561 = vmatpush1.msra.mxu0 %v902
    %1562 = vmatprep.subr.mxu0 %v907
    %1563 = vmatpush1.msra.mxu0 %v906
    %1564 = vmatprep.subr.mxu0 %v911
    %1565 = vmatpush1.msra.mxu0 %v910
    %1566 = vmatprep.subr.mxu0 %v915
    %1567 = vmatpush1.msra.mxu0 %v914
    %1568 = vmatprep.subr.mxu0 %v919
    %1569 = vmatpush1.msra.mxu0 %v918
    %1570 = vmatprep.subr.mxu0 %v923
    %1571 = vmatpush1.msra.mxu0 %v922
    %1572 = vmatprep.subr.mxu0 %v927
    %1573 = vmatpush1.msra.mxu0 %v926
    %1574 = vmatprep.subr.mxu0 %v931
    %1575 = vmatpush1.msra.mxu0 %v930
    %1576 = vmatprep.subr.mxu0 %v935
    %1577 = vmatpush1.msra.mxu0 %v934
    %1578 = vmatprep.subr.mxu0 %v939
    %1579 = vmatpush1.msra.mxu0 %v938
    %1580 = vmatprep.subr.mxu0 %v943
    %1581 = vmatpush1.msra.mxu0 %v942
    %1582 = vmatprep.subr.mxu0 %v947
    %1583 = vmatpush1.msra.mxu0 %v946
    %1584 = vmatprep.subr.mxu0 %v951
    %1585 = vmatpush1.msra.mxu0 %v950
    %1586 = vmatprep.subr.mxu0 %v955
    %1587 = vmatpush1.msra.mxu0 %v954
    %1588 = vmatprep.subr.mxu0 %v959
    %1589 = vmatpush1.msra.mxu0 %v958
    %1590 = vmatprep.subr.mxu0 %v963
    %1591 = vmatpush1.msra.mxu0 %v962
    %1592 = vmatprep.subr.mxu0 %v967
    %1593 = vmatpush1.msra.mxu0 %v966
    %1594 = vmatprep.subr.mxu0 %v971
    %1595 = vmatpush1.msra.mxu0 %v970
    %1596 = vmatprep.subr.mxu0 %v975
    %1597 = vmatpush1.msra.mxu0 %v974
    %1598 = vmatprep.subr.mxu0 %v979
    %1599 = vmatpush1.msra.mxu0 %v978
    %1600 = vmatprep.mubr.f32.mxu0 %v83
    %1601 = vmatmul.mubr.f32.gmra.mrb[0].mxu0 %v82
    %v1602 = vpop.f32.mrb[0].mxu0
    %v1603 = vadd.f32 %v1532, %v1602
    %v1604 = vpop.f32.mrb[0].mxu0
    %v1605 = vadd.f32 %v1534, %v1604
    %1606 = vdwg.mxu0
    %1607 = vmatprep.subr.mxu0 %v983
    %1608 = vmatpush1.msra.mxu0 %v982
    %1609 = vmatprep.subr.mxu0 %v987
    %1610 = vmatpush1.msra.mxu0 %v986
    %1611 = vmatprep.subr.mxu0 %v991
    %1612 = vmatpush1.msra.mxu0 %v990
    %1613 = vmatprep.subr.mxu0 %v995
    %1614 = vmatpush1.msra.mxu0 %v994
    %1615 = vmatprep.subr.mxu0 %v999
    %1616 = vmatpush1.msra.mxu0 %v998
    %1617 = vmatprep.subr.mxu0 %v1003
    %1618 = vmatpush1.msra.mxu0 %v1002
    %1619 = vmatprep.subr.mxu0 %v1007
    %1620 = vmatpush1.msra.mxu0 %v1006
    %1621 = vmatprep.subr.mxu0 %v1011
    %1622 = vmatpush1.msra.mxu0 %v1010
    %1623 = vmatprep.subr.mxu0 %v1015
    %1624 = vmatpush1.msra.mxu0 %v1014
    %1625 = vmatprep.subr.mxu0 %v1019
    %1626 = vmatpush1.msra.mxu0 %v1018
    %1627 = vmatprep.subr.mxu0 %v1023
    %1628 = vmatpush1.msra.mxu0 %v1022
    %1629 = vmatprep.subr.mxu0 %v1027
    %1630 = vmatpush1.msra.mxu0 %v1026
    %1631 = vmatprep.subr.mxu0 %v1031
    %1632 = vmatpush1.msra.mxu0 %v1030
    %1633 = vmatprep.subr.mxu0 %v1035
    %1634 = vmatpush1.msra.mxu0 %v1034
    %1635 = vmatprep.subr.mxu0 %v1039
    %1636 = vmatpush1.msra.mxu0 %v1038
    %1637 = vmatprep.subr.mxu0 %v1043
    %1638 = vmatpush1.msra.mxu0 %v1042
    %1639 = vmatprep.subr.mxu0 %v1047
    %1640 = vmatpush1.msra.mxu0 %v1046
    %1641 = vmatprep.subr.mxu0 %v1051
    %1642 = vmatpush1.msra.mxu0 %v1050
    %1643 = vmatprep.subr.mxu0 %v1055
    %1644 = vmatpush1.msra.mxu0 %v1054
    %1645 = vmatprep.subr.mxu0 %v1059
    %1646 = vmatpush1.msra.mxu0 %v1058
    %1647 = vmatprep.subr.mxu0 %v1063
    %1648 = vmatpush1.msra.mxu0 %v1062
    %1649 = vmatprep.subr.mxu0 %v1067
    %1650 = vmatpush1.msra.mxu0 %v1066
    %1651 = vmatprep.subr.mxu0 %v1071
    %1652 = vmatpush1.msra.mxu0 %v1070
    %1653 = vmatprep.subr.mxu0 %v1075
    %1654 = vmatpush1.msra.mxu0 %v1074
    %1655 = vmatprep.subr.mxu0 %v1079
    %1656 = vmatpush1.msra.mxu0 %v1078
    %1657 = vmatprep.subr.mxu0 %v1083
    %1658 = vmatpush1.msra.mxu0 %v1082
    %1659 = vmatprep.subr.mxu0 %v1087
    %1660 = vmatpush1.msra.mxu0 %v1086
    %1661 = vmatprep.subr.mxu0 %v1091
    %1662 = vmatpush1.msra.mxu0 %v1090
    %1663 = vmatprep.subr.mxu0 %v1095
    %1664 = vmatpush1.msra.mxu0 %v1094
    %1665 = vmatprep.subr.mxu0 %v1099
    %1666 = vmatpush1.msra.mxu0 %v1098
    %1667 = vmatprep.subr.mxu0 %v1103
    %1668 = vmatpush1.msra.mxu0 %v1102
    %1669 = vmatprep.subr.mxu0 %v1107
    %1670 = vmatpush1.msra.mxu0 %v1106
    %1671 = vmatprep.mubr.f32.mxu0 %v85
    %1672 = vmatmul.mubr.f32.gmra.mrb[0].mxu0 %v84
    %v1673 = vpop.f32.mrb[0].mxu0
    %v1674 = vadd.f32 %v1603, %v1673
    %v1675 = vpop.f32.mrb[0].mxu0
    %v1676 = vadd.f32 %v1605, %v1675
    %1677 = vdwg.mxu0
    %1678 = vmatprep.subr.mxu0 %v89
    %1679 = vmatpush1.msra.mxu0 %v88
    %1680 = vmatprep.subr.mxu0 %v93
    %1681 = vmatpush1.msra.mxu0 %v92
    %1682 = vmatprep.subr.mxu0 %v97
    %1683 = vmatpush1.msra.mxu0 %v96
    %1684 = vmatprep.subr.mxu0 %v101
    %1685 = vmatpush1.msra.mxu0 %v100
    %1686 = vmatprep.subr.mxu0 %v105
    %1687 = vmatpush1.msra.mxu0 %v104
    %1688 = vmatprep.subr.mxu0 %v109
    %1689 = vmatpush1.msra.mxu0 %v108
    %1690 = vmatprep.subr.mxu0 %v113
    %1691 = vmatpush1.msra.mxu0 %v112
    %1692 = vmatprep.subr.mxu0 %v117
    %1693 = vmatpush1.msra.mxu0 %v116
    %1694 = vmatprep.subr.mxu0 %v121
    %1695 = vmatpush1.msra.mxu0 %v120
    %1696 = vmatprep.subr.mxu0 %v125
    %1697 = vmatpush1.msra.mxu0 %v124
    %1698 = vmatprep.subr.mxu0 %v129
    %1699 = vmatpush1.msra.mxu0 %v128
    %1700 = vmatprep.subr.mxu0 %v133
    %1701 = vmatpush1.msra.mxu0 %v132
    %1702 = vmatprep.subr.mxu0 %v137
    %1703 = vmatpush1.msra.mxu0 %v136
    %1704 = vmatprep.subr.mxu0 %v141
    %1705 = vmatpush1.msra.mxu0 %v140
    %1706 = vmatprep.subr.mxu0 %v145
    %1707 = vmatpush1.msra.mxu0 %v144
    %1708 = vmatprep.subr.mxu0 %v149
    %1709 = vmatpush1.msra.mxu0 %v148
    %1710 = vmatprep.subr.mxu0 %v153
    %1711 = vmatpush1.msra.mxu0 %v152
    %1712 = vmatprep.subr.mxu0 %v157
    %1713 = vmatpush1.msra.mxu0 %v156
    %1714 = vmatprep.subr.mxu0 %v161
    %1715 = vmatpush1.msra.mxu0 %v160
    %1716 = vmatprep.subr.mxu0 %v165
    %1717 = vmatpush1.msra.mxu0 %v164
    %1718 = vmatprep.subr.mxu0 %v169
    %1719 = vmatpush1.msra.mxu0 %v168
    %1720 = vmatprep.subr.mxu0 %v173
    %1721 = vmatpush1.msra.mxu0 %v172
    %1722 = vmatprep.subr.mxu0 %v177
    %1723 = vmatpush1.msra.mxu0 %v176
    %1724 = vmatprep.subr.mxu0 %v181
    %1725 = vmatpush1.msra.mxu0 %v180
    %1726 = vmatprep.subr.mxu0 %v185
    %1727 = vmatpush1.msra.mxu0 %v184
    %1728 = vmatprep.subr.mxu0 %v189
    %1729 = vmatpush1.msra.mxu0 %v188
    %1730 = vmatprep.subr.mxu0 %v193
    %1731 = vmatpush1.msra.mxu0 %v192
    %1732 = vmatprep.subr.mxu0 %v197
    %1733 = vmatpush1.msra.mxu0 %v196
    %1734 = vmatprep.subr.mxu0 %v201
    %1735 = vmatpush1.msra.mxu0 %v200
    %1736 = vmatprep.subr.mxu0 %v205
    %1737 = vmatpush1.msra.mxu0 %v204
    %1738 = vmatprep.subr.mxu0 %v209
    %1739 = vmatpush1.msra.mxu0 %v208
    %1740 = vmatprep.subr.mxu0 %v213
    %1741 = vmatpush1.msra.mxu0 %v212
    %1742 = vmatprep.mubr.f32.mxu0 %v71
    %1743 = vmatmul.mubr.f32.gmra.mrb[0].mxu0 %v70
    %v1744 = vpop.f32.mrb[0].mxu0
    %v1745 = vadd.f32 0.0, %v1744
    %v1746 = vpop.f32.mrb[0].mxu0
    %v1747 = vadd.f32 0.0, %v1746
    %1748 = vdwg.mxu0
    %1749 = vmatprep.subr.mxu0 %v217
    %1750 = vmatpush1.msra.mxu0 %v216
    %1751 = vmatprep.subr.mxu0 %v221
    %1752 = vmatpush1.msra.mxu0 %v220
    %1753 = vmatprep.subr.mxu0 %v225
    %1754 = vmatpush1.msra.mxu0 %v224
    %1755 = vmatprep.subr.mxu0 %v229
    %1756 = vmatpush1.msra.mxu0 %v228
    %1757 = vmatprep.subr.mxu0 %v233
    %1758 = vmatpush1.msra.mxu0 %v232
    %1759 = vmatprep.subr.mxu0 %v237
    %1760 = vmatpush1.msra.mxu0 %v236
    %1761 = vmatprep.subr.mxu0 %v241
    %1762 = vmatpush1.msra.mxu0 %v240
    %1763 = vmatprep.subr.mxu0 %v245
    %1764 = vmatpush1.msra.mxu0 %v244
    %1765 = vmatprep.subr.mxu0 %v249
    %1766 = vmatpush1.msra.mxu0 %v248
    %1767 = vmatprep.subr.mxu0 %v253
    %1768 = vmatpush1.msra.mxu0 %v252
    %1769 = vmatprep.subr.mxu0 %v257
    %1770 = vmatpush1.msra.mxu0 %v256
    %1771 = vmatprep.subr.mxu0 %v261
    %1772 = vmatpush1.msra.mxu0 %v260
    %1773 = vmatprep.subr.mxu0 %v265
    %1774 = vmatpush1.msra.mxu0 %v264
    %1775 = vmatprep.subr.mxu0 %v269
    %1776 = vmatpush1.msra.mxu0 %v268
    %1777 = vmatprep.subr.mxu0 %v273
    %1778 = vmatpush1.msra.mxu0 %v272
    %1779 = vmatprep.subr.mxu0 %v277
    %1780 = vmatpush1.msra.mxu0 %v276
    %1781 = vmatprep.subr.mxu0 %v281
    %1782 = vmatpush1.msra.mxu0 %v280
    %1783 = vmatprep.subr.mxu0 %v285
    %1784 = vmatpush1.msra.mxu0 %v284
    %1785 = vmatprep.subr.mxu0 %v289
    %1786 = vmatpush1.msra.mxu0 %v288
    %1787 = vmatprep.subr.mxu0 %v293
    %1788 = vmatpush1.msra.mxu0 %v292
    %1789 = vmatprep.subr.mxu0 %v297
    %1790 = vmatpush1.msra.mxu0 %v296
    %1791 = vmatprep.subr.mxu0 %v301
    %1792 = vmatpush1.msra.mxu0 %v300
    %1793 = vmatprep.subr.mxu0 %v305
    %1794 = vmatpush1.msra.mxu0 %v304
    %1795 = vmatprep.subr.mxu0 %v309
    %1796 = vmatpush1.msra.mxu0 %v308
    %1797 = vmatprep.subr.mxu0 %v313
    %1798 = vmatpush1.msra.mxu0 %v312
    %1799 = vmatprep.subr.mxu0 %v317
    %1800 = vmatpush1.msra.mxu0 %v316
    %1801 = vmatprep.subr.mxu0 %v321
    %1802 = vmatpush1.msra.mxu0 %v320
    %1803 = vmatprep.subr.mxu0 %v325
    %1804 = vmatpush1.msra.mxu0 %v324
    %1805 = vmatprep.subr.mxu0 %v329
    %1806 = vmatpush1.msra.mxu0 %v328
    %1807 = vmatprep.subr.mxu0 %v333
    %1808 = vmatpush1.msra.mxu0 %v332
    %1809 = vmatprep.subr.mxu0 %v337
    %1810 = vmatpush1.msra.mxu0 %v336
    %1811 = vmatprep.subr.mxu0 %v341
    %1812 = vmatpush1.msra.mxu0 %v340
    %1813 = vmatprep.mubr.f32.mxu0 %v73
    %1814 = vmatmul.mubr.f32.gmra.mrb[0].mxu0 %v72
    %v1815 = vpop.f32.mrb[0].mxu0
    %v1816 = vadd.f32 %v1745, %v1815
    %v1817 = vpop.f32.mrb[0].mxu0
    %v1818 = vadd.f32 %v1747, %v1817
    %1819 = vdwg.mxu0
    %1820 = vmatprep.subr.mxu0 %v345
    %1821 = vmatpush1.msra.mxu0 %v344
    %1822 = vmatprep.subr.mxu0 %v349
    %1823 = vmatpush1.msra.mxu0 %v348
    %1824 = vmatprep.subr.mxu0 %v353
    %1825 = vmatpush1.msra.mxu0 %v352
    %1826 = vmatprep.subr.mxu0 %v357
    %1827 = vmatpush1.msra.mxu0 %v356
    %1828 = vmatprep.subr.mxu0 %v361
    %1829 = vmatpush1.msra.mxu0 %v360
    %1830 = vmatprep.subr.mxu0 %v365
    %1831 = vmatpush1.msra.mxu0 %v364
    %1832 = vmatprep.subr.mxu0 %v369
    %1833 = vmatpush1.msra.mxu0 %v368
    %1834 = vmatprep.subr.mxu0 %v373
    %1835 = vmatpush1.msra.mxu0 %v372
    %1836 = vmatprep.subr.mxu0 %v377
    %1837 = vmatpush1.msra.mxu0 %v376
    %1838 = vmatprep.subr.mxu0 %v381
    %1839 = vmatpush1.msra.mxu0 %v380
    %1840 = vmatprep.subr.mxu0 %v385
    %1841 = vmatpush1.msra.mxu0 %v384
    %1842 = vmatprep.subr.mxu0 %v389
    %1843 = vmatpush1.msra.mxu0 %v388
    %1844 = vmatprep.subr.mxu0 %v393
    %1845 = vmatpush1.msra.mxu0 %v392
    %1846 = vmatprep.subr.mxu0 %v397
    %1847 = vmatpush1.msra.mxu0 %v396
    %1848 = vmatprep.subr.mxu0 %v401
    %1849 = vmatpush1.msra.mxu0 %v400
    %1850 = vmatprep.subr.mxu0 %v405
    %1851 = vmatpush1.msra.mxu0 %v404
    %1852 = vmatprep.subr.mxu0 %v409
    %1853 = vmatpush1.msra.mxu0 %v408
    %1854 = vmatprep.subr.mxu0 %v413
    %1855 = vmatpush1.msra.mxu0 %v412
    %1856 = vmatprep.subr.mxu0 %v417
    %1857 = vmatpush1.msra.mxu0 %v416
    %1858 = vmatprep.subr.mxu0 %v421
    %1859 = vmatpush1.msra.mxu0 %v420
    %1860 = vmatprep.subr.mxu0 %v425
    %1861 = vmatpush1.msra.mxu0 %v424
    %1862 = vmatprep.subr.mxu0 %v429
    %1863 = vmatpush1.msra.mxu0 %v428
    %1864 = vmatprep.subr.mxu0 %v433
    %1865 = vmatpush1.msra.mxu0 %v432
    %1866 = vmatprep.subr.mxu0 %v437
    %1867 = vmatpush1.msra.mxu0 %v436
    %1868 = vmatprep.subr.mxu0 %v441
    %1869 = vmatpush1.msra.mxu0 %v440
    %1870 = vmatprep.subr.mxu0 %v445
    %1871 = vmatpush1.msra.mxu0 %v444
    %1872 = vmatprep.subr.mxu0 %v449
    %1873 = vmatpush1.msra.mxu0 %v448
    %1874 = vmatprep.subr.mxu0 %v453
    %1875 = vmatpush1.msra.mxu0 %v452
    %1876 = vmatprep.subr.mxu0 %v457
    %1877 = vmatpush1.msra.mxu0 %v456
    %1878 = vmatprep.subr.mxu0 %v461
    %1879 = vmatpush1.msra.mxu0 %v460
    %1880 = vmatprep.subr.mxu0 %v465
    %1881 = vmatpush1.msra.mxu0 %v464
    %1882 = vmatprep.subr.mxu0 %v469
    %1883 = vmatpush1.msra.mxu0 %v468
    %1884 = vmatprep.mubr.f32.mxu0 %v75
    %1885 = vmatmul.mubr.f32.gmra.mrb[0].mxu0 %v74
    %v1886 = vpop.f32.mrb[0].mxu0
    %v1887 = vadd.f32 %v1816, %v1886
    %v1888 = vpop.f32.mrb[0].mxu0
    %v1889 = vadd.f32 %v1818, %v1888
    %1890 = vdwg.mxu0
    %1891 = vmatprep.subr.mxu0 %v473
    %1892 = vmatpush1.msra.mxu0 %v472
    %1893 = vmatprep.subr.mxu0 %v477
    %1894 = vmatpush1.msra.mxu0 %v476
    %1895 = vmatprep.subr.mxu0 %v481
    %1896 = vmatpush1.msra.mxu0 %v480
    %1897 = vmatprep.subr.mxu0 %v485
    %1898 = vmatpush1.msra.mxu0 %v484
    %1899 = vmatprep.subr.mxu0 %v489
    %1900 = vmatpush1.msra.mxu0 %v488
    %1901 = vmatprep.subr.mxu0 %v493
    %1902 = vmatpush1.msra.mxu0 %v492
    %1903 = vmatprep.subr.mxu0 %v497
    %1904 = vmatpush1.msra.mxu0 %v496
    %1905 = vmatprep.subr.mxu0 %v501
    %1906 = vmatpush1.msra.mxu0 %v500
    %1907 = vmatprep.subr.mxu0 %v505
    %1908 = vmatpush1.msra.mxu0 %v504
    %1909 = vmatprep.subr.mxu0 %v509
    %1910 = vmatpush1.msra.mxu0 %v508
    %1911 = vmatprep.subr.mxu0 %v513
    %1912 = vmatpush1.msra.mxu0 %v512
    %1913 = vmatprep.subr.mxu0 %v517
    %1914 = vmatpush1.msra.mxu0 %v516
    %1915 = vmatprep.subr.mxu0 %v521
    %1916 = vmatpush1.msra.mxu0 %v520
    %1917 = vmatprep.subr.mxu0 %v525
    %1918 = vmatpush1.msra.mxu0 %v524
    %1919 = vmatprep.subr.mxu0 %v529
    %1920 = vmatpush1.msra.mxu0 %v528
    %1921 = vmatprep.subr.mxu0 %v533
    %1922 = vmatpush1.msra.mxu0 %v532
    %1923 = vmatprep.subr.mxu0 %v537
    %1924 = vmatpush1.msra.mxu0 %v536
    %1925 = vmatprep.subr.mxu0 %v541
    %1926 = vmatpush1.msra.mxu0 %v540
    %1927 = vmatprep.subr.mxu0 %v545
    %1928 = vmatpush1.msra.mxu0 %v544
    %1929 = vmatprep.subr.mxu0 %v549
    %1930 = vmatpush1.msra.mxu0 %v548
    %1931 = vmatprep.subr.mxu0 %v553
    %1932 = vmatpush1.msra.mxu0 %v552
    %1933 = vmatprep.subr.mxu0 %v557
    %1934 = vmatpush1.msra.mxu0 %v556
    %1935 = vmatprep.subr.mxu0 %v561
    %1936 = vmatpush1.msra.mxu0 %v560
    %1937 = vmatprep.subr.mxu0 %v565
    %1938 = vmatpush1.msra.mxu0 %v564
    %1939 = vmatprep.subr.mxu0 %v569
    %1940 = vmatpush1.msra.mxu0 %v568
    %1941 = vmatprep.subr.mxu0 %v573
    %1942 = vmatpush1.msra.mxu0 %v572
    %1943 = vmatprep.subr.mxu0 %v577
    %1944 = vmatpush1.msra.mxu0 %v576
    %1945 = vmatprep.subr.mxu0 %v581
    %1946 = vmatpush1.msra.mxu0 %v580
    %1947 = vmatprep.subr.mxu0 %v585
    %1948 = vmatpush1.msra.mxu0 %v584
    %1949 = vmatprep.subr.mxu0 %v589
    %1950 = vmatpush1.msra.mxu0 %v588
    %1951 = vmatprep.subr.mxu0 %v593
    %1952 = vmatpush1.msra.mxu0 %v592
    %1953 = vmatprep.subr.mxu0 %v597
    %1954 = vmatpush1.msra.mxu0 %v596
    %1955 = vmatprep.mubr.f32.mxu0 %v77
    %1956 = vmatmul.mubr.f32.gmra.mrb[0].mxu0 %v76
    %v1957 = vpop.f32.mrb[0].mxu0
    %v1958 = vadd.f32 %v1887, %v1957
    %v1959 = vpop.f32.mrb[0].mxu0
    %v1960 = vadd.f32 %v1889, %v1959
    %1961 = vdwg.mxu0
    %1962 = vmatprep.subr.mxu0 %v601
    %1963 = vmatpush1.msra.mxu0 %v600
    %1964 = vmatprep.subr.mxu0 %v605
    %1965 = vmatpush1.msra.mxu0 %v604
    %1966 = vmatprep.subr.mxu0 %v609
    %1967 = vmatpush1.msra.mxu0 %v608
    %1968 = vmatprep.subr.mxu0 %v613
    %1969 = vmatpush1.msra.mxu0 %v612
    %1970 = vmatprep.subr.mxu0 %v617
    %1971 = vmatpush1.msra.mxu0 %v616
    %1972 = vmatprep.subr.mxu0 %v621
    %1973 = vmatpush1.msra.mxu0 %v620
    %1974 = vmatprep.subr.mxu0 %v625
    %1975 = vmatpush1.msra.mxu0 %v624
    %1976 = vmatprep.subr.mxu0 %v629
    %1977 = vmatpush1.msra.mxu0 %v628
    %1978 = vmatprep.subr.mxu0 %v633
    %1979 = vmatpush1.msra.mxu0 %v632
    %1980 = vmatprep.subr.mxu0 %v637
    %1981 = vmatpush1.msra.mxu0 %v636
    %1982 = vmatprep.subr.mxu0 %v641
    %1983 = vmatpush1.msra.mxu0 %v640
    %1984 = vmatprep.subr.mxu0 %v645
    %1985 = vmatpush1.msra.mxu0 %v644
    %1986 = vmatprep.subr.mxu0 %v649
    %1987 = vmatpush1.msra.mxu0 %v648
    %1988 = vmatprep.subr.mxu0 %v653
    %1989 = vmatpush1.msra.mxu0 %v652
    %1990 = vmatprep.subr.mxu0 %v657
    %1991 = vmatpush1.msra.mxu0 %v656
    %1992 = vmatprep.subr.mxu0 %v661
    %1993 = vmatpush1.msra.mxu0 %v660
    %1994 = vmatprep.subr.mxu0 %v665
    %1995 = vmatpush1.msra.mxu0 %v664
    %1996 = vmatprep.subr.mxu0 %v669
    %1997 = vmatpush1.msra.mxu0 %v668
    %1998 = vmatprep.subr.mxu0 %v673
    %1999 = vmatpush1.msra.mxu0 %v672
    %2000 = vmatprep.subr.mxu0 %v677
    %2001 = vmatpush1.msra.mxu0 %v676
    %2002 = vmatprep.subr.mxu0 %v681
    %2003 = vmatpush1.msra.mxu0 %v680
    %2004 = vmatprep.subr.mxu0 %v685
    %2005 = vmatpush1.msra.mxu0 %v684
    %2006 = vmatprep.subr.mxu0 %v689
    %2007 = vmatpush1.msra.mxu0 %v688
    %2008 = vmatprep.subr.mxu0 %v693
    %2009 = vmatpush1.msra.mxu0 %v692
    %2010 = vmatprep.subr.mxu0 %v697
    %2011 = vmatpush1.msra.mxu0 %v696
    %2012 = vmatprep.subr.mxu0 %v701
    %2013 = vmatpush1.msra.mxu0 %v700
    %2014 = vmatprep.subr.mxu0 %v705
    %2015 = vmatpush1.msra.mxu0 %v704
    %2016 = vmatprep.subr.mxu0 %v709
    %2017 = vmatpush1.msra.mxu0 %v708
    %2018 = vmatprep.subr.mxu0 %v713
    %2019 = vmatpush1.msra.mxu0 %v712
    %2020 = vmatprep.subr.mxu0 %v717
    %2021 = vmatpush1.msra.mxu0 %v716
    %2022 = vmatprep.subr.mxu0 %v721
    %2023 = vmatpush1.msra.mxu0 %v720
    %2024 = vmatprep.subr.mxu0 %v725
    %2025 = vmatpush1.msra.mxu0 %v724
    %2026 = vmatprep.mubr.f32.mxu0 %v79
    %2027 = vmatmul.mubr.f32.gmra.mrb[0].mxu0 %v78
    %v2028 = vpop.f32.mrb[0].mxu0
    %v2029 = vadd.f32 %v1958, %v2028
    %v2030 = vpop.f32.mrb[0].mxu0
    %v2031 = vadd.f32 %v1960, %v2030
    %2032 = vdwg.mxu0
    %2033 = vmatprep.subr.mxu0 %v729
    %2034 = vmatpush1.msra.mxu0 %v728
    %2035 = vmatprep.subr.mxu0 %v733
    %2036 = vmatpush1.msra.mxu0 %v732
    %2037 = vmatprep.subr.mxu0 %v737
    %2038 = vmatpush1.msra.mxu0 %v736
    %2039 = vmatprep.subr.mxu0 %v741
    %2040 = vmatpush1.msra.mxu0 %v740
    %2041 = vmatprep.subr.mxu0 %v745
    %2042 = vmatpush1.msra.mxu0 %v744
    %2043 = vmatprep.subr.mxu0 %v749
    %2044 = vmatpush1.msra.mxu0 %v748
    %2045 = vmatprep.subr.mxu0 %v753
    %2046 = vmatpush1.msra.mxu0 %v752
    %2047 = vmatprep.subr.mxu0 %v757
    %2048 = vmatpush1.msra.mxu0 %v756
    %2049 = vmatprep.subr.mxu0 %v761
    %2050 = vmatpush1.msra.mxu0 %v760
    %2051 = vmatprep.subr.mxu0 %v765
    %2052 = vmatpush1.msra.mxu0 %v764
    %2053 = vmatprep.subr.mxu0 %v769
    %2054 = vmatpush1.msra.mxu0 %v768
    %2055 = vmatprep.subr.mxu0 %v773
    %2056 = vmatpush1.msra.mxu0 %v772
    %2057 = vmatprep.subr.mxu0 %v777
    %2058 = vmatpush1.msra.mxu0 %v776
    %2059 = vmatprep.subr.mxu0 %v781
    %2060 = vmatpush1.msra.mxu0 %v780
    %2061 = vmatprep.subr.mxu0 %v785
    %2062 = vmatpush1.msra.mxu0 %v784
    %2063 = vmatprep.subr.mxu0 %v789
    %2064 = vmatpush1.msra.mxu0 %v788
    %2065 = vmatprep.subr.mxu0 %v793
    %2066 = vmatpush1.msra.mxu0 %v792
    %2067 = vmatprep.subr.mxu0 %v797
    %2068 = vmatpush1.msra.mxu0 %v796
    %2069 = vmatprep.subr.mxu0 %v801
    %2070 = vmatpush1.msra.mxu0 %v800
    %2071 = vmatprep.subr.mxu0 %v805
    %2072 = vmatpush1.msra.mxu0 %v804
    %2073 = vmatprep.subr.mxu0 %v809
    %2074 = vmatpush1.msra.mxu0 %v808
    %2075 = vmatprep.subr.mxu0 %v813
    %2076 = vmatpush1.msra.mxu0 %v812
    %2077 = vmatprep.subr.mxu0 %v817
    %2078 = vmatpush1.msra.mxu0 %v816
    %2079 = vmatprep.subr.mxu0 %v821
    %2080 = vmatpush1.msra.mxu0 %v820
    %2081 = vmatprep.subr.mxu0 %v825
    %2082 = vmatpush1.msra.mxu0 %v824
    %2083 = vmatprep.subr.mxu0 %v829
    %2084 = vmatpush1.msra.mxu0 %v828
    %2085 = vmatprep.subr.mxu0 %v833
    %2086 = vmatpush1.msra.mxu0 %v832
    %2087 = vmatprep.subr.mxu0 %v837
    %2088 = vmatpush1.msra.mxu0 %v836
    %2089 = vmatprep.subr.mxu0 %v841
    %2090 = vmatpush1.msra.mxu0 %v840
    %2091 = vmatprep.subr.mxu0 %v845
    %2092 = vmatpush1.msra.mxu0 %v844
    %2093 = vmatprep.subr.mxu0 %v849
    %2094 = vmatpush1.msra.mxu0 %v848
    %2095 = vmatprep.subr.mxu0 %v853
    %2096 = vmatpush1.msra.mxu0 %v852
    %2097 = vmatprep.mubr.f32.mxu0 %v81
    %2098 = vmatmul.mubr.f32.gmra.mrb[0].mxu0 %v80
    %v2099 = vpop.f32.mrb[0].mxu0
    %v2100 = vadd.f32 %v2029, %v2099
    %v2101 = vpop.f32.mrb[0].mxu0
    %v2102 = vadd.f32 %v2031, %v2101
    %2103 = vdwg.mxu0
    %2104 = vmatprep.subr.mxu0 %v857
    %2105 = vmatpush1.msra.mxu0 %v856
    %2106 = vmatprep.subr.mxu0 %v861
    %2107 = vmatpush1.msra.mxu0 %v860
    %2108 = vmatprep.subr.mxu0 %v865
    %2109 = vmatpush1.msra.mxu0 %v864
    %2110 = vmatprep.subr.mxu0 %v869
    %2111 = vmatpush1.msra.mxu0 %v868
    %2112 = vmatprep.subr.mxu0 %v873
    %2113 = vmatpush1.msra.mxu0 %v872
    %2114 = vmatprep.subr.mxu0 %v877
    %2115 = vmatpush1.msra.mxu0 %v876
    %2116 = vmatprep.subr.mxu0 %v881
    %2117 = vmatpush1.msra.mxu0 %v880
    %2118 = vmatprep.subr.mxu0 %v885
    %2119 = vmatpush1.msra.mxu0 %v884
    %2120 = vmatprep.subr.mxu0 %v889
    %2121 = vmatpush1.msra.mxu0 %v888
    %2122 = vmatprep.subr.mxu0 %v893
    %2123 = vmatpush1.msra.mxu0 %v892
    %2124 = vmatprep.subr.mxu0 %v897
    %2125 = vmatpush1.msra.mxu0 %v896
    %2126 = vmatprep.subr.mxu0 %v901
    %2127 = vmatpush1.msra.mxu0 %v900
    %2128 = vmatprep.subr.mxu0 %v905
    %2129 = vmatpush1.msra.mxu0 %v904
    %2130 = vmatprep.subr.mxu0 %v909
    %2131 = vmatpush1.msra.mxu0 %v908
    %2132 = vmatprep.subr.mxu0 %v913
    %2133 = vmatpush1.msra.mxu0 %v912
    %2134 = vmatprep.subr.mxu0 %v917
    %2135 = vmatpush1.msra.mxu0 %v916
    %2136 = vmatprep.subr.mxu0 %v921
    %2137 = vmatpush1.msra.mxu0 %v920
    %2138 = vmatprep.subr.mxu0 %v925
    %2139 = vmatpush1.msra.mxu0 %v924
    %2140 = vmatprep.subr.mxu0 %v929
    %2141 = vmatpush1.msra.mxu0 %v928
    %2142 = vmatprep.subr.mxu0 %v933
    %2143 = vmatpush1.msra.mxu0 %v932
    %2144 = vmatprep.subr.mxu0 %v937
    %2145 = vmatpush1.msra.mxu0 %v936
    %2146 = vmatprep.subr.mxu0 %v941
    %2147 = vmatpush1.msra.mxu0 %v940
    %2148 = vmatprep.subr.mxu0 %v945
    %2149 = vmatpush1.msra.mxu0 %v944
    %2150 = vmatprep.subr.mxu0 %v949
    %2151 = vmatpush1.msra.mxu0 %v948
    %2152 = vmatprep.subr.mxu0 %v953
    %2153 = vmatpush1.msra.mxu0 %v952
    %2154 = vmatprep.subr.mxu0 %v957
    %2155 = vmatpush1.msra.mxu0 %v956
    %2156 = vmatprep.subr.mxu0 %v961
    %2157 = vmatpush1.msra.mxu0 %v960
    %2158 = vmatprep.subr.mxu0 %v965
    %2159 = vmatpush1.msra.mxu0 %v964
    %2160 = vmatprep.subr.mxu0 %v969
    %2161 = vmatpush1.msra.mxu0 %v968
    %2162 = vmatprep.subr.mxu0 %v973
    %2163 = vmatpush1.msra.mxu0 %v972
    %2164 = vmatprep.subr.mxu0 %v977
    %2165 = vmatpush1.msra.mxu0 %v976
    %2166 = vmatprep.subr.mxu0 %v981
    %2167 = vmatpush1.msra.mxu0 %v980
    %2168 = vmatprep.mubr.f32.mxu0 %v83
    %2169 = vmatmul.mubr.f32.gmra.mrb[0].mxu0 %v82
    %v2170 = vpop.f32.mrb[0].mxu0
    %v2171 = vadd.f32 %v2100, %v2170
    %v2172 = vpop.f32.mrb[0].mxu0
    %v2173 = vadd.f32 %v2102, %v2172
    %2174 = vdwg.mxu0
    %2175 = vmatprep.subr.mxu0 %v985
    %2176 = vmatpush1.msra.mxu0 %v984
    %2177 = vmatprep.subr.mxu0 %v989
    %2178 = vmatpush1.msra.mxu0 %v988
    %2179 = vmatprep.subr.mxu0 %v993
    %2180 = vmatpush1.msra.mxu0 %v992
    %2181 = vmatprep.subr.mxu0 %v997
    %2182 = vmatpush1.msra.mxu0 %v996
    %2183 = vmatprep.subr.mxu0 %v1001
    %2184 = vmatpush1.msra.mxu0 %v1000
    %2185 = vmatprep.subr.mxu0 %v1005
    %2186 = vmatpush1.msra.mxu0 %v1004
    %2187 = vmatprep.subr.mxu0 %v1009
    %2188 = vmatpush1.msra.mxu0 %v1008
    %2189 = vmatprep.subr.mxu0 %v1013
    %2190 = vmatpush1.msra.mxu0 %v1012
    %2191 = vmatprep.subr.mxu0 %v1017
    %2192 = vmatpush1.msra.mxu0 %v1016
    %2193 = vmatprep.subr.mxu0 %v1021
    %2194 = vmatpush1.msra.mxu0 %v1020
    %2195 = vmatprep.subr.mxu0 %v1025
    %2196 = vmatpush1.msra.mxu0 %v1024
    %2197 = vmatprep.subr.mxu0 %v1029
    %2198 = vmatpush1.msra.mxu0 %v1028
    %2199 = vmatprep.subr.mxu0 %v1033
    %2200 = vmatpush1.msra.mxu0 %v1032
    %2201 = vmatprep.subr.mxu0 %v1037
    %2202 = vmatpush1.msra.mxu0 %v1036
    %2203 = vmatprep.subr.mxu0 %v1041
    %2204 = vmatpush1.msra.mxu0 %v1040
    %2205 = vmatprep.subr.mxu0 %v1045
    %2206 = vmatpush1.msra.mxu0 %v1044
    %2207 = vmatprep.subr.mxu0 %v1049
    %2208 = vmatpush1.msra.mxu0 %v1048
    %2209 = vmatprep.subr.mxu0 %v1053
    %2210 = vmatpush1.msra.mxu0 %v1052
    %2211 = vmatprep.subr.mxu0 %v1057
    %2212 = vmatpush1.msra.mxu0 %v1056
    %2213 = vmatprep.subr.mxu0 %v1061
    %2214 = vmatpush1.msra.mxu0 %v1060
    %2215 = vmatprep.subr.mxu0 %v1065
    %2216 = vmatpush1.msra.mxu0 %v1064
    %2217 = vmatprep.subr.mxu0 %v1069
    %2218 = vmatpush1.msra.mxu0 %v1068
    %2219 = vmatprep.subr.mxu0 %v1073
    %2220 = vmatpush1.msra.mxu0 %v1072
    %2221 = vmatprep.subr.mxu0 %v1077
    %2222 = vmatpush1.msra.mxu0 %v1076
    %2223 = vmatprep.subr.mxu0 %v1081
    %2224 = vmatpush1.msra.mxu0 %v1080
    %2225 = vmatprep.subr.mxu0 %v1085
    %2226 = vmatpush1.msra.mxu0 %v1084
    %2227 = vmatprep.subr.mxu0 %v1089
    %2228 = vmatpush1.msra.mxu0 %v1088
    %2229 = vmatprep.subr.mxu0 %v1093
    %2230 = vmatpush1.msra.mxu0 %v1092
    %2231 = vmatprep.subr.mxu0 %v1097
    %2232 = vmatpush1.msra.mxu0 %v1096
    %2233 = vmatprep.subr.mxu0 %v1101
    %2234 = vmatpush1.msra.mxu0 %v1100
    %2235 = vmatprep.subr.mxu0 %v1105
    %2236 = vmatpush1.msra.mxu0 %v1104
    %2237 = vmatprep.subr.mxu0 %v1109
    %2238 = vmatpush1.msra.mxu0 %v1108
    %2239 = vmatprep.mubr.f32.mxu0 %v85
    %2240 = vmatmul.mubr.f32.gmra.mrb[0].mxu0 %v84
    %v2241 = vpop.f32.mrb[0].mxu0
    %v2242 = vadd.f32 %v2171, %v2241
    %v2243 = vpop.f32.mrb[0].mxu0
    %v2244 = vadd.f32 %v2173, %v2243
    %2245 = vdwg.mxu0
    %v2246 = vld [vmem:[#allocation7] sm:$0xf]
    %v2248 = vlaneseq
    %v2249 = vshrl.u32 %v2248, 7
    %v2250 = vsub.s32 0, %v2249
    %v2251 = vrot.slane %v2246, %v2250
    %v2252 = vlaneseq
    %v2253 = vshrl.u32 %v2252, 7
    %v2254 = vsub.s32 1, %v2253
    %v2255 = vrot.slane %v2246, %v2254
    %v2256 = vlaneseq
    %v2257 = vshrl.u32 %v2256, 7
    %v2258 = vsub.s32 2, %v2257
    %v2259 = vrot.slane %v2246, %v2258
    %v2260 = vlaneseq
    %v2261 = vshrl.u32 %v2260, 7
    %v2262 = vsub.s32 3, %v2261
    %v2263 = vrot.slane %v2246, %v2262
    %v2268 = vmul.f32 %v1674, %v2251
    %v2269 = vmul.f32 %v1676, %v2255
    %v2270 = vmul.f32 %v2242, %v2259
    %v2271 = vmul.f32 %v2244, %v2263
    %v2272 = vld [vmem:[#allocation8] sm:$0xf]
    %v2274 = vlaneseq
    %v2275 = vshrl.u32 %v2274, 7
    %v2276 = vsub.s32 0, %v2275
    %v2277 = vrot.slane %v2272, %v2276
    %v2278 = vlaneseq
    %v2279 = vshrl.u32 %v2278, 7
    %v2280 = vsub.s32 1, %v2279
    %v2281 = vrot.slane %v2272, %v2280
    %v2282 = vlaneseq
    %v2283 = vshrl.u32 %v2282, 7
    %v2284 = vsub.s32 2, %v2283
    %v2285 = vrot.slane %v2272, %v2284
    %v2286 = vlaneseq
    %v2287 = vshrl.u32 %v2286, 7
    %v2288 = vsub.s32 3, %v2287
    %v2289 = vrot.slane %v2272, %v2288
    %v2294 = vadd.f32 %v2268, %v2277
    %v2295 = vadd.f32 %v2269, %v2281
    %v2296 = vadd.f32 %v2270, %v2285
    %v2297 = vadd.f32 %v2271, %v2289
    %vm2298 = vcmp.ge.f32.partialorder %v2294, 0.0
    %vm2299 = vcmp.ge.f32.partialorder %v2295, 0.0
    %vm2300 = vcmp.ge.f32.partialorder %v2296, 0.0
    %vm2301 = vcmp.ge.f32.partialorder %v2297, 0.0
    %v2302 = vmul.f32 %v2294, 0.01
    %v2303 = vmul.f32 %v2295, 0.01
    %v2304 = vmul.f32 %v2296, 0.01
    %v2305 = vmul.f32 %v2297, 0.01
    %v2306 = vsel %vm2298, %v2294, %v2302
    %v2307 = vsel %vm2299, %v2295, %v2303
    %v2308 = vsel %vm2300, %v2296, %v2304
    %v2309 = vsel %vm2301, %v2297, %v2305
    %2310 = vst [vmem:[#allocation10] sm:$0xff] %v2306
    %2311 = vst [vmem:[#allocation10 + $0x8] sm:$0xff] %v2307
    %2312 = vst [vmem:[#allocation11] sm:$0xff] %v2308
    %2313 = vst [vmem:[#allocation11 + $0x8] sm:$0xff] %v2309
    // Predicated region
    $region34: #{tpu_custom_call.1} parent=1 // pred_check
      _
    $region35: #{tpu_custom_call.1} parent=1 // pred_check_branch
      %2315 = sbr.rel (0) target = $region37
    $region36: #{tpu_custom_call.1} parent=1 // pred_region
      %s2317 = ssub.s32 256, 256
      %2318 = vsyncadd [#allocation4], %s2317
      %s2320 = sshll.u32 [#allocation10], 4
      %s2321 = int_to_ptr.vmem [resolvable:$true] %s2320
      %2323 = dma.vmem_to_hbm [thread:$0]  %s2321, 256, %s4, [#allocation4]
    $region37: #{tpu_custom_call.1} parent=1 // pred_fallthru
      _
    // Predicated region
    $region38: #{tpu_custom_call.1} parent=1 // pred_check
      _
    $region39: #{tpu_custom_call.1} parent=1 // pred_check_branch
      %2325 = sbr.rel (0) target = $region41
    $region40: #{tpu_custom_call.1} parent=1 // pred_region
      %s2327 = ssub.s32 256, 256
      %2328 = vsyncadd [#allocation12], %s2327
      %s2330 = sshll.u32 [#allocation11], 4
      %s2331 = int_to_ptr.vmem [resolvable:$true] %s2330
      %2333 = dma.vmem_to_hbm [thread:$0]  %s2331, 256, %s5, [#allocation12]
    $region41: #{tpu_custom_call.1} parent=1 // pred_fallthru
      _
    // Predicated region
    $region42: #{tpu_custom_call.1} parent=1 // pred_check
      _
    $region43: #{tpu_custom_call.1} parent=1 // pred_check_branch
      %2335 = sbr.rel (0) target = $region45
    $region44: #{tpu_custom_call.1} parent=1 // pred_region
      %2336 = dma.done [#allocation4], 256
    $region45: #{tpu_custom_call.1} parent=1 // pred_fallthru
      _
    // Predicated region
    $region46: #{tpu_custom_call.1} parent=1 // pred_check
      _
    $region47: #{tpu_custom_call.1} parent=1 // pred_check_branch
      %2338 = sbr.rel (0) target = $region49
    $region48: #{tpu_custom_call.1} parent=1 // pred_region
      %2339 = dma.done [#allocation12], 256
    $region49: #{tpu_custom_call.1} parent=1 // pred_fallthru
      _
    %2340 = vsyncpa [#allocation3], 1
    %2341 = vsyncpa [#allocation6], 1
    %2342 = vsyncpa [#allocation9], 1
    %2343 = vsyncpa [#allocation4], 1
    %2344 = vsyncpa [#allocation12], 1

</llo_original>
